<compile_context>
chip_gen: v7x
topology: tpu7x:2x2x1
jax: 0.10.0
libtpu: 0.0.40
codegen_flags: <defaults>
</compile_context>

<pallas_src>
import functools

import jax
import jax.numpy as jnp
from jax.experimental import pallas as pl
from jax.experimental.pallas import tpu as pltpu


def _round_up(v: int, m: int) -> int:
    return ((v + m - 1) // m) * m


def _conv2d_kernel(x_ref, w_ref, b_ref, o_ref, *, f: int, W: int):
    # x_ref: (N, C, L_in)   lane-flat, right-padded image (L_in >= max_tap_off + L_out)
    # w_ref: (f*f, K, C)    per-tap weight slabs
    # b_ref: (K, 1) f32     o_ref: (N, K, L_out), L_out a multiple of 128
    N = x_ref.shape[0]
    L_out = o_ref.shape[2]
    bias = b_ref[...].astype(jnp.float32)  # (K, 1), broadcast over lanes

    for n in range(N):  # static unroll, N is tiny; single invocation, no grid
        acc = None
        for kh in range(f):
            for kw in range(f):
                start = kh * W + kw  # pure lane offset -- no reshape/relayout
                tap = x_ref[n, :, pl.ds(start, L_out)]          # (C, L_out)
                part = jnp.dot(w_ref[kh * f + kw], tap,
                               preferred_element_type=jnp.float32)  # MXU, (K, L_out)
                acc = part if acc is None else acc + part
        # Lane-dense, unmasked store (K x L_out, L_out % 128 == 0).
        o_ref[n] = (acc + bias).astype(o_ref.dtype)


def conv2d_tracer_forward(x_nchw, w_oihw, bias, stride: int,
                          compute_dtype=jnp.bfloat16):
    """Semantics of Conv2dTracer.forward: record x.size(3), run the Conv2d."""
    im = x_nchw.shape[3]  # what the tracer stores in self.im

    N, C, H, W = x_nchw.shape
    K, _, f, _ = w_oihw.shape
    OH = (H - f) // stride + 1
    OW = (W - f) // stride + 1
    out_dtype = x_nchw.dtype

    HW = H * W
    L_out = _round_up(HW, 128)                 # lane-dense output width
    max_start = (f - 1) * W + (f - 1)          # largest tap lane offset
    L_in = _round_up(max_start + L_out, 128)   # pad so every tap is full width

    # Metadata-only flatten + small right-pad (padding never feeds valid outputs).
    x_flat = jnp.pad(x_nchw.reshape(N, C, HW), ((0, 0), (0, 0), (0, L_in - HW)))

    # Tiny weight re-pack: (K, C, f, f) -> (f*f, K, C) so tap t = kh*f+kw is w_ref[t].
    w_packed = jnp.transpose(w_oihw, (2, 3, 0, 1)).reshape(f * f, K, C)
    b_col = bias.reshape(K, 1).astype(jnp.float32)

    # bf16 MXU operands by default on all generations (f32 accumulate in-kernel).
    if compute_dtype is not None:
        x_flat = x_flat.astype(compute_dtype)
        w_packed = w_packed.astype(compute_dtype)

    out_flat = pl.pallas_call(
        functools.partial(_conv2d_kernel, f=f, W=W),
        out_shape=jax.ShapeDtypeStruct((N, K, L_out), out_dtype),
        in_specs=[
            pl.BlockSpec(memory_space=pltpu.MemorySpace.VMEM),
            pl.BlockSpec(memory_space=pltpu.MemorySpace.VMEM),
            pl.BlockSpec(memory_space=pltpu.MemorySpace.VMEM),
        ],
        out_specs=pl.BlockSpec(memory_space=pltpu.MemorySpace.VMEM),
    )(x_flat, w_packed, b_col)

    # Crop lane padding (metadata reshape + contiguous slice), then subsample
    # the dense stride-1 grid for the requested stride.
    out_dense = out_flat[:, :, :HW].reshape(N, K, H, W)
    out = out_dense[:, :, : (OH - 1) * stride + 1 : stride,
                          : (OW - 1) * stride + 1 : stride]
    return out, im


if __name__ == "__main__":
    # Shapes consistent with the tracer: batch=2, in_channels=4, spatial=16,
    # out_channels=8, kernel_size=3, stride=1 (padding=0, Conv2d default).
    N, C, H, W = 2, 4, 16, 16
    K, f, s = 8, 3, 1

    key = jax.random.PRNGKey(0)
    kx, kw_, kb = jax.random.split(key, 3)
    x = jax.random.normal(kx, (N, C, H, W), dtype=jnp.float32)
    weight = jax.random.normal(kw_, (K, C, f, f), dtype=jnp.float32) * 0.1
    bias = jax.random.normal(kb, (K,), dtype=jnp.float32) * 0.1

    OH = (H - f) // s + 1
    OW = (W - f) // s + 1

    # Default path: bf16 MXU operands, f32 accumulate.
    out, im = conv2d_tracer_forward(x, weight, bias, s)
    out = jax.block_until_ready(out)
    assert out.shape == (N, K, OH, OW)
    assert im == W

    # Reference for the bf16 path: f32 conv on bf16-rounded operands.
    x_bf = x.astype(jnp.bfloat16).astype(jnp.float32)
    w_bf = weight.astype(jnp.bfloat16).astype(jnp.float32)
    ref_bf = jax.lax.conv_general_dilated(
        x_bf, w_bf, window_strides=(s, s), padding="VALID",
        dimension_numbers=("NCHW", "OIHW", "NCHW"),
        precision=jax.lax.Precision.HIGHEST,
    ) + bias.reshape(1, K, 1, 1)
    assert jnp.allclose(out, ref_bf, atol=1e-2, rtol=1e-2)

    # Exact-numerics path: f32 operands end to end, tight tolerance.
    out32, _ = conv2d_tracer_forward(x, weight, bias, s, compute_dtype=None)
    out32 = jax.block_until_ready(out32)
    ref32 = jax.lax.conv_general_dilated(
        x, weight, window_strides=(s, s), padding="VALID",
        dimension_numbers=("NCHW", "OIHW", "NCHW"),
        precision=jax.lax.Precision.HIGHEST,
    ) + bias.reshape(1, K, 1, 1)
    assert jnp.allclose(out32, ref32, atol=1e-4, rtol=1e-4)

    print("KERNEL_OK")
</pallas_src>

<mosaic_0001>
module attributes {stable_mosaic.version = 11 : i64} {
  func.func @_conv2d_kernel(%arg0: memref<2x4x384xbf16, #tpu.memory_space<vmem>>, %arg1: memref<9x8x4xbf16, #tpu.memory_space<vmem>>, %arg2: memref<8x1xf32, #tpu.memory_space<vmem>>, %arg3: memref<2x8x256xf32, #tpu.memory_space<vmem>>) attributes {dimension_semantics = [], scalar_prefetch = 0 : i64, scratch_operands = 0 : i64, tpu.core_type = #tpu.core_type<tc>} {
    %c0 = arith.constant 0 : index
    %c0_0 = arith.constant 0 : index
    %0 = vector.load %arg2[%c0, %c0_0] : memref<8x1xf32, #tpu.memory_space<vmem>>, vector<8x1xf32>
    %c0_1 = arith.constant 0 : index
    %c0_2 = arith.constant 0 : index
    %c0_3 = arith.constant 0 : index
    %1 = vector.load %arg0[%c0_1, %c0_2, %c0_3] : memref<2x4x384xbf16, #tpu.memory_space<vmem>>, vector<1x4x256xbf16>
    %2 = vector.shape_cast %1 : vector<1x4x256xbf16> to vector<4x256xbf16>
    %c0_4 = arith.constant 0 : index
    %c0_5 = arith.constant 0 : index
    %c0_6 = arith.constant 0 : index
    %3 = vector.load %arg1[%c0_4, %c0_5, %c0_6] : memref<9x8x4xbf16, #tpu.memory_space<vmem>>, vector<1x8x4xbf16>
    %4 = vector.shape_cast %3 : vector<1x8x4xbf16> to vector<8x4xbf16>
    %cst = arith.constant dense<0.000000e+00> : vector<8x256xf32>
    %5 = tpu.matmul %4, %2, %cst {dimension_numbers = #tpu.dot_dimension_numbers<[1], [0], [0], [1], [0, 0, 1, 1], [], []>} : vector<8x4xbf16>, vector<4x256xbf16>, vector<8x256xf32> -> vector<8x256xf32>
    %c0_7 = arith.constant 0 : index
    %c0_8 = arith.constant 0 : index
    %c1 = arith.constant 1 : index
    %6 = vector.load %arg0[%c0_7, %c0_8, %c1] : memref<2x4x384xbf16, #tpu.memory_space<vmem>>, vector<1x4x256xbf16>
    %7 = vector.shape_cast %6 : vector<1x4x256xbf16> to vector<4x256xbf16>
    %c1_9 = arith.constant 1 : index
    %c0_10 = arith.constant 0 : index
    %c0_11 = arith.constant 0 : index
    %8 = vector.load %arg1[%c1_9, %c0_10, %c0_11] : memref<9x8x4xbf16, #tpu.memory_space<vmem>>, vector<1x8x4xbf16>
    %9 = vector.shape_cast %8 : vector<1x8x4xbf16> to vector<8x4xbf16>
    %cst_12 = arith.constant dense<0.000000e+00> : vector<8x256xf32>
    %10 = tpu.matmul %9, %7, %cst_12 {dimension_numbers = #tpu.dot_dimension_numbers<[1], [0], [0], [1], [0, 0, 1, 1], [], []>} : vector<8x4xbf16>, vector<4x256xbf16>, vector<8x256xf32> -> vector<8x256xf32>
    %11 = arith.addf %5, %10 : vector<8x256xf32>
    %c0_13 = arith.constant 0 : index
    %c0_14 = arith.constant 0 : index
    %c2 = arith.constant 2 : index
    %12 = vector.load %arg0[%c0_13, %c0_14, %c2] : memref<2x4x384xbf16, #tpu.memory_space<vmem>>, vector<1x4x256xbf16>
    %13 = vector.shape_cast %12 : vector<1x4x256xbf16> to vector<4x256xbf16>
    %c2_15 = arith.constant 2 : index
    %c0_16 = arith.constant 0 : index
    %c0_17 = arith.constant 0 : index
    %14 = vector.load %arg1[%c2_15, %c0_16, %c0_17] : memref<9x8x4xbf16, #tpu.memory_space<vmem>>, vector<1x8x4xbf16>
    %15 = vector.shape_cast %14 : vector<1x8x4xbf16> to vector<8x4xbf16>
    %cst_18 = arith.constant dense<0.000000e+00> : vector<8x256xf32>
    %16 = tpu.matmul %15, %13, %cst_18 {dimension_numbers = #tpu.dot_dimension_numbers<[1], [0], [0], [1], [0, 0, 1, 1], [], []>} : vector<8x4xbf16>, vector<4x256xbf16>, vector<8x256xf32> -> vector<8x256xf32>
    %17 = arith.addf %11, %16 : vector<8x256xf32>
    %c0_19 = arith.constant 0 : index
    %c0_20 = arith.constant 0 : index
    %c16 = arith.constant 16 : index
    %18 = vector.load %arg0[%c0_19, %c0_20, %c16] : memref<2x4x384xbf16, #tpu.memory_space<vmem>>, vector<1x4x256xbf16>
    %19 = vector.shape_cast %18 : vector<1x4x256xbf16> to vector<4x256xbf16>
    %c3 = arith.constant 3 : index
    %c0_21 = arith.constant 0 : index
    %c0_22 = arith.constant 0 : index
    %20 = vector.load %arg1[%c3, %c0_21, %c0_22] : memref<9x8x4xbf16, #tpu.memory_space<vmem>>, vector<1x8x4xbf16>
    %21 = vector.shape_cast %20 : vector<1x8x4xbf16> to vector<8x4xbf16>
    %cst_23 = arith.constant dense<0.000000e+00> : vector<8x256xf32>
    %22 = tpu.matmul %21, %19, %cst_23 {dimension_numbers = #tpu.dot_dimension_numbers<[1], [0], [0], [1], [0, 0, 1, 1], [], []>} : vector<8x4xbf16>, vector<4x256xbf16>, vector<8x256xf32> -> vector<8x256xf32>
    %23 = arith.addf %17, %22 : vector<8x256xf32>
    %c0_24 = arith.constant 0 : index
    %c0_25 = arith.constant 0 : index
    %c17 = arith.constant 17 : index
    %24 = vector.load %arg0[%c0_24, %c0_25, %c17] : memref<2x4x384xbf16, #tpu.memory_space<vmem>>, vector<1x4x256xbf16>
    %25 = vector.shape_cast %24 : vector<1x4x256xbf16> to vector<4x256xbf16>
    %c4 = arith.constant 4 : index
    %c0_26 = arith.constant 0 : index
    %c0_27 = arith.constant 0 : index
    %26 = vector.load %arg1[%c4, %c0_26, %c0_27] : memref<9x8x4xbf16, #tpu.memory_space<vmem>>, vector<1x8x4xbf16>
    %27 = vector.shape_cast %26 : vector<1x8x4xbf16> to vector<8x4xbf16>
    %cst_28 = arith.constant dense<0.000000e+00> : vector<8x256xf32>
    %28 = tpu.matmul %27, %25, %cst_28 {dimension_numbers = #tpu.dot_dimension_numbers<[1], [0], [0], [1], [0, 0, 1, 1], [], []>} : vector<8x4xbf16>, vector<4x256xbf16>, vector<8x256xf32> -> vector<8x256xf32>
    %29 = arith.addf %23, %28 : vector<8x256xf32>
    %c0_29 = arith.constant 0 : index
    %c0_30 = arith.constant 0 : index
    %c18 = arith.constant 18 : index
    %30 = vector.load %arg0[%c0_29, %c0_30, %c18] : memref<2x4x384xbf16, #tpu.memory_space<vmem>>, vector<1x4x256xbf16>
    %31 = vector.shape_cast %30 : vector<1x4x256xbf16> to vector<4x256xbf16>
    %c5 = arith.constant 5 : index
    %c0_31 = arith.constant 0 : index
    %c0_32 = arith.constant 0 : index
    %32 = vector.load %arg1[%c5, %c0_31, %c0_32] : memref<9x8x4xbf16, #tpu.memory_space<vmem>>, vector<1x8x4xbf16>
    %33 = vector.shape_cast %32 : vector<1x8x4xbf16> to vector<8x4xbf16>
    %cst_33 = arith.constant dense<0.000000e+00> : vector<8x256xf32>
    %34 = tpu.matmul %33, %31, %cst_33 {dimension_numbers = #tpu.dot_dimension_numbers<[1], [0], [0], [1], [0, 0, 1, 1], [], []>} : vector<8x4xbf16>, vector<4x256xbf16>, vector<8x256xf32> -> vector<8x256xf32>
    %35 = arith.addf %29, %34 : vector<8x256xf32>
    %c0_34 = arith.constant 0 : index
    %c0_35 = arith.constant 0 : index
    %c32 = arith.constant 32 : index
    %36 = vector.load %arg0[%c0_34, %c0_35, %c32] : memref<2x4x384xbf16, #tpu.memory_space<vmem>>, vector<1x4x256xbf16>
    %37 = vector.shape_cast %36 : vector<1x4x256xbf16> to vector<4x256xbf16>
    %c6 = arith.constant 6 : index
    %c0_36 = arith.constant 0 : index
    %c0_37 = arith.constant 0 : index
    %38 = vector.load %arg1[%c6, %c0_36, %c0_37] : memref<9x8x4xbf16, #tpu.memory_space<vmem>>, vector<1x8x4xbf16>
    %39 = vector.shape_cast %38 : vector<1x8x4xbf16> to vector<8x4xbf16>
    %cst_38 = arith.constant dense<0.000000e+00> : vector<8x256xf32>
    %40 = tpu.matmul %39, %37, %cst_38 {dimension_numbers = #tpu.dot_dimension_numbers<[1], [0], [0], [1], [0, 0, 1, 1], [], []>} : vector<8x4xbf16>, vector<4x256xbf16>, vector<8x256xf32> -> vector<8x256xf32>
    %41 = arith.addf %35, %40 : vector<8x256xf32>
    %c0_39 = arith.constant 0 : index
    %c0_40 = arith.constant 0 : index
    %c33 = arith.constant 33 : index
    %42 = vector.load %arg0[%c0_39, %c0_40, %c33] : memref<2x4x384xbf16, #tpu.memory_space<vmem>>, vector<1x4x256xbf16>
    %43 = vector.shape_cast %42 : vector<1x4x256xbf16> to vector<4x256xbf16>
    %c7 = arith.constant 7 : index
    %c0_41 = arith.constant 0 : index
    %c0_42 = arith.constant 0 : index
    %44 = vector.load %arg1[%c7, %c0_41, %c0_42] : memref<9x8x4xbf16, #tpu.memory_space<vmem>>, vector<1x8x4xbf16>
    %45 = vector.shape_cast %44 : vector<1x8x4xbf16> to vector<8x4xbf16>
    %cst_43 = arith.constant dense<0.000000e+00> : vector<8x256xf32>
    %46 = tpu.matmul %45, %43, %cst_43 {dimension_numbers = #tpu.dot_dimension_numbers<[1], [0], [0], [1], [0, 0, 1, 1], [], []>} : vector<8x4xbf16>, vector<4x256xbf16>, vector<8x256xf32> -> vector<8x256xf32>
    %47 = arith.addf %41, %46 : vector<8x256xf32>
    %c0_44 = arith.constant 0 : index
    %c0_45 = arith.constant 0 : index
    %c34 = arith.constant 34 : index
    %48 = vector.load %arg0[%c0_44, %c0_45, %c34] : memref<2x4x384xbf16, #tpu.memory_space<vmem>>, vector<1x4x256xbf16>
    %49 = vector.shape_cast %48 : vector<1x4x256xbf16> to vector<4x256xbf16>
    %c8 = arith.constant 8 : index
    %c0_46 = arith.constant 0 : index
    %c0_47 = arith.constant 0 : index
    %50 = vector.load %arg1[%c8, %c0_46, %c0_47] : memref<9x8x4xbf16, #tpu.memory_space<vmem>>, vector<1x8x4xbf16>
    %51 = vector.shape_cast %50 : vector<1x8x4xbf16> to vector<8x4xbf16>
    %cst_48 = arith.constant dense<0.000000e+00> : vector<8x256xf32>
    %52 = tpu.matmul %51, %49, %cst_48 {dimension_numbers = #tpu.dot_dimension_numbers<[1], [0], [0], [1], [0, 0, 1, 1], [], []>} : vector<8x4xbf16>, vector<4x256xbf16>, vector<8x256xf32> -> vector<8x256xf32>
    %53 = arith.addf %47, %52 : vector<8x256xf32>
    %54 = vector.broadcast %0 : vector<8x1xf32> to vector<8x256xf32>
    %55 = arith.addf %53, %54 : vector<8x256xf32>
    %c0_49 = arith.constant 0 : index
    %c0_50 = arith.constant 0 : index
    %c0_51 = arith.constant 0 : index
    %56 = vector.load %arg3[%c0_49, %c0_50, %c0_51] : memref<2x8x256xf32, #tpu.memory_space<vmem>>, vector<1x8x256xf32>
    %57 = vector.shape_cast %56 : vector<1x8x256xf32> to vector<8x256xf32>
    %58 = vector.shape_cast %55 : vector<8x256xf32> to vector<1x8x256xf32>
    tpu.vector_store %arg3[%c0_49, %c0_50, %c0_51], %58 {strides = array<i32>} : memref<2x8x256xf32, #tpu.memory_space<vmem>>, vector<1x8x256xf32>,
    %c1_52 = arith.constant 1 : index
    %c0_53 = arith.constant 0 : index
    %c0_54 = arith.constant 0 : index
    %59 = vector.load %arg0[%c1_52, %c0_53, %c0_54] : memref<2x4x384xbf16, #tpu.memory_space<vmem>>, vector<1x4x256xbf16>
    %60 = vector.shape_cast %59 : vector<1x4x256xbf16> to vector<4x256xbf16>
    %c0_55 = arith.constant 0 : index
    %c0_56 = arith.constant 0 : index
    %c0_57 = arith.constant 0 : index
    %61 = vector.load %arg1[%c0_55, %c0_56, %c0_57] : memref<9x8x4xbf16, #tpu.memory_space<vmem>>, vector<1x8x4xbf16>
    %62 = vector.shape_cast %61 : vector<1x8x4xbf16> to vector<8x4xbf16>
    %cst_58 = arith.constant dense<0.000000e+00> : vector<8x256xf32>
    %63 = tpu.matmul %62, %60, %cst_58 {dimension_numbers = #tpu.dot_dimension_numbers<[1], [0], [0], [1], [0, 0, 1, 1], [], []>} : vector<8x4xbf16>, vector<4x256xbf16>, vector<8x256xf32> -> vector<8x256xf32>
    %c1_59 = arith.constant 1 : index
    %c0_60 = arith.constant 0 : index
    %c1_61 = arith.constant 1 : index
    %64 = vector.load %arg0[%c1_59, %c0_60, %c1_61] : memref<2x4x384xbf16, #tpu.memory_space<vmem>>, vector<1x4x256xbf16>
    %65 = vector.shape_cast %64 : vector<1x4x256xbf16> to vector<4x256xbf16>
    %c1_62 = arith.constant 1 : index
    %c0_63 = arith.constant 0 : index
    %c0_64 = arith.constant 0 : index
    %66 = vector.load %arg1[%c1_62, %c0_63, %c0_64] : memref<9x8x4xbf16, #tpu.memory_space<vmem>>, vector<1x8x4xbf16>
    %67 = vector.shape_cast %66 : vector<1x8x4xbf16> to vector<8x4xbf16>
    %cst_65 = arith.constant dense<0.000000e+00> : vector<8x256xf32>
    %68 = tpu.matmul %67, %65, %cst_65 {dimension_numbers = #tpu.dot_dimension_numbers<[1], [0], [0], [1], [0, 0, 1, 1], [], []>} : vector<8x4xbf16>, vector<4x256xbf16>, vector<8x256xf32> -> vector<8x256xf32>
    %69 = arith.addf %63, %68 : vector<8x256xf32>
    %c1_66 = arith.constant 1 : index
    %c0_67 = arith.constant 0 : index
    %c2_68 = arith.constant 2 : index
    %70 = vector.load %arg0[%c1_66, %c0_67, %c2_68] : memref<2x4x384xbf16, #tpu.memory_space<vmem>>, vector<1x4x256xbf16>
    %71 = vector.shape_cast %70 : vector<1x4x256xbf16> to vector<4x256xbf16>
    %c2_69 = arith.constant 2 : index
    %c0_70 = arith.constant 0 : index
    %c0_71 = arith.constant 0 : index
    %72 = vector.load %arg1[%c2_69, %c0_70, %c0_71] : memref<9x8x4xbf16, #tpu.memory_space<vmem>>, vector<1x8x4xbf16>
    %73 = vector.shape_cast %72 : vector<1x8x4xbf16> to vector<8x4xbf16>
    %cst_72 = arith.constant dense<0.000000e+00> : vector<8x256xf32>
    %74 = tpu.matmul %73, %71, %cst_72 {dimension_numbers = #tpu.dot_dimension_numbers<[1], [0], [0], [1], [0, 0, 1, 1], [], []>} : vector<8x4xbf16>, vector<4x256xbf16>, vector<8x256xf32> -> vector<8x256xf32>
    %75 = arith.addf %69, %74 : vector<8x256xf32>
    %c1_73 = arith.constant 1 : index
    %c0_74 = arith.constant 0 : index
    %c16_75 = arith.constant 16 : index
    %76 = vector.load %arg0[%c1_73, %c0_74, %c16_75] : memref<2x4x384xbf16, #tpu.memory_space<vmem>>, vector<1x4x256xbf16>
    %77 = vector.shape_cast %76 : vector<1x4x256xbf16> to vector<4x256xbf16>
    %c3_76 = arith.constant 3 : index
    %c0_77 = arith.constant 0 : index
    %c0_78 = arith.constant 0 : index
    %78 = vector.load %arg1[%c3_76, %c0_77, %c0_78] : memref<9x8x4xbf16, #tpu.memory_space<vmem>>, vector<1x8x4xbf16>
    %79 = vector.shape_cast %78 : vector<1x8x4xbf16> to vector<8x4xbf16>
    %cst_79 = arith.constant dense<0.000000e+00> : vector<8x256xf32>
    %80 = tpu.matmul %79, %77, %cst_79 {dimension_numbers = #tpu.dot_dimension_numbers<[1], [0], [0], [1], [0, 0, 1, 1], [], []>} : vector<8x4xbf16>, vector<4x256xbf16>, vector<8x256xf32> -> vector<8x256xf32>
    %81 = arith.addf %75, %80 : vector<8x256xf32>
    %c1_80 = arith.constant 1 : index
    %c0_81 = arith.constant 0 : index
    %c17_82 = arith.constant 17 : index
    %82 = vector.load %arg0[%c1_80, %c0_81, %c17_82] : memref<2x4x384xbf16, #tpu.memory_space<vmem>>, vector<1x4x256xbf16>
    %83 = vector.shape_cast %82 : vector<1x4x256xbf16> to vector<4x256xbf16>
    %c4_83 = arith.constant 4 : index
    %c0_84 = arith.constant 0 : index
    %c0_85 = arith.constant 0 : index
    %84 = vector.load %arg1[%c4_83, %c0_84, %c0_85] : memref<9x8x4xbf16, #tpu.memory_space<vmem>>, vector<1x8x4xbf16>
    %85 = vector.shape_cast %84 : vector<1x8x4xbf16> to vector<8x4xbf16>
    %cst_86 = arith.constant dense<0.000000e+00> : vector<8x256xf32>
    %86 = tpu.matmul %85, %83, %cst_86 {dimension_numbers = #tpu.dot_dimension_numbers<[1], [0], [0], [1], [0, 0, 1, 1], [], []>} : vector<8x4xbf16>, vector<4x256xbf16>, vector<8x256xf32> -> vector<8x256xf32>
    %87 = arith.addf %81, %86 : vector<8x256xf32>
    %c1_87 = arith.constant 1 : index
    %c0_88 = arith.constant 0 : index
    %c18_89 = arith.constant 18 : index
    %88 = vector.load %arg0[%c1_87, %c0_88, %c18_89] : memref<2x4x384xbf16, #tpu.memory_space<vmem>>, vector<1x4x256xbf16>
    %89 = vector.shape_cast %88 : vector<1x4x256xbf16> to vector<4x256xbf16>
    %c5_90 = arith.constant 5 : index
    %c0_91 = arith.constant 0 : index
    %c0_92 = arith.constant 0 : index
    %90 = vector.load %arg1[%c5_90, %c0_91, %c0_92] : memref<9x8x4xbf16, #tpu.memory_space<vmem>>, vector<1x8x4xbf16>
    %91 = vector.shape_cast %90 : vector<1x8x4xbf16> to vector<8x4xbf16>
    %cst_93 = arith.constant dense<0.000000e+00> : vector<8x256xf32>
    %92 = tpu.matmul %91, %89, %cst_93 {dimension_numbers = #tpu.dot_dimension_numbers<[1], [0], [0], [1], [0, 0, 1, 1], [], []>} : vector<8x4xbf16>, vector<4x256xbf16>, vector<8x256xf32> -> vector<8x256xf32>
    %93 = arith.addf %87, %92 : vector<8x256xf32>
    %c1_94 = arith.constant 1 : index
    %c0_95 = arith.constant 0 : index
    %c32_96 = arith.constant 32 : index
    %94 = vector.load %arg0[%c1_94, %c0_95, %c32_96] : memref<2x4x384xbf16, #tpu.memory_space<vmem>>, vector<1x4x256xbf16>
    %95 = vector.shape_cast %94 : vector<1x4x256xbf16> to vector<4x256xbf16>
    %c6_97 = arith.constant 6 : index
    %c0_98 = arith.constant 0 : index
    %c0_99 = arith.constant 0 : index
    %96 = vector.load %arg1[%c6_97, %c0_98, %c0_99] : memref<9x8x4xbf16, #tpu.memory_space<vmem>>, vector<1x8x4xbf16>
    %97 = vector.shape_cast %96 : vector<1x8x4xbf16> to vector<8x4xbf16>
    %cst_100 = arith.constant dense<0.000000e+00> : vector<8x256xf32>
    %98 = tpu.matmul %97, %95, %cst_100 {dimension_numbers = #tpu.dot_dimension_numbers<[1], [0], [0], [1], [0, 0, 1, 1], [], []>} : vector<8x4xbf16>, vector<4x256xbf16>, vector<8x256xf32> -> vector<8x256xf32>
    %99 = arith.addf %93, %98 : vector<8x256xf32>
    %c1_101 = arith.constant 1 : index
    %c0_102 = arith.constant 0 : index
    %c33_103 = arith.constant 33 : index
    %100 = vector.load %arg0[%c1_101, %c0_102, %c33_103] : memref<2x4x384xbf16, #tpu.memory_space<vmem>>, vector<1x4x256xbf16>
    %101 = vector.shape_cast %100 : vector<1x4x256xbf16> to vector<4x256xbf16>
    %c7_104 = arith.constant 7 : index
    %c0_105 = arith.constant 0 : index
    %c0_106 = arith.constant 0 : index
    %102 = vector.load %arg1[%c7_104, %c0_105, %c0_106] : memref<9x8x4xbf16, #tpu.memory_space<vmem>>, vector<1x8x4xbf16>
    %103 = vector.shape_cast %102 : vector<1x8x4xbf16> to vector<8x4xbf16>
    %cst_107 = arith.constant dense<0.000000e+00> : vector<8x256xf32>
    %104 = tpu.matmul %103, %101, %cst_107 {dimension_numbers = #tpu.dot_dimension_numbers<[1], [0], [0], [1], [0, 0, 1, 1], [], []>} : vector<8x4xbf16>, vector<4x256xbf16>, vector<8x256xf32> -> vector<8x256xf32>
    %105 = arith.addf %99, %104 : vector<8x256xf32>
    %c1_108 = arith.constant 1 : index
    %c0_109 = arith.constant 0 : index
    %c34_110 = arith.constant 34 : index
    %106 = vector.load %arg0[%c1_108, %c0_109, %c34_110] : memref<2x4x384xbf16, #tpu.memory_space<vmem>>, vector<1x4x256xbf16>
    %107 = vector.shape_cast %106 : vector<1x4x256xbf16> to vector<4x256xbf16>
    %c8_111 = arith.constant 8 : index
    %c0_112 = arith.constant 0 : index
    %c0_113 = arith.constant 0 : index
    %108 = vector.load %arg1[%c8_111, %c0_112, %c0_113] : memref<9x8x4xbf16, #tpu.memory_space<vmem>>, vector<1x8x4xbf16>
    %109 = vector.shape_cast %108 : vector<1x8x4xbf16> to vector<8x4xbf16>
    %cst_114 = arith.constant dense<0.000000e+00> : vector<8x256xf32>
    %110 = tpu.matmul %109, %107, %cst_114 {dimension_numbers = #tpu.dot_dimension_numbers<[1], [0], [0], [1], [0, 0, 1, 1], [], []>} : vector<8x4xbf16>, vector<4x256xbf16>, vector<8x256xf32> -> vector<8x256xf32>
    %111 = arith.addf %105, %110 : vector<8x256xf32>
    %112 = vector.broadcast %0 : vector<8x1xf32> to vector<8x256xf32>
    %113 = arith.addf %111, %112 : vector<8x256xf32>
    %c1_115 = arith.constant 1 : index
    %c0_116 = arith.constant 0 : index
    %c0_117 = arith.constant 0 : index
    %114 = vector.load %arg3[%c1_115, %c0_116, %c0_117] : memref<2x8x256xf32, #tpu.memory_space<vmem>>, vector<1x8x256xf32>
    %115 = vector.shape_cast %114 : vector<1x8x256xf32> to vector<8x256xf32>
    %116 = vector.shape_cast %113 : vector<8x256xf32> to vector<1x8x256xf32>
    tpu.vector_store %arg3[%c1_115, %c0_116, %c0_117], %116 {strides = array<i32>} : memref<2x8x256xf32, #tpu.memory_space<vmem>>, vector<1x8x256xf32>,
    return
  }
}

</mosaic_0001>

<llo_original>
// kernel: tpu_custom_call.1
$region0: #{tpu_custom_call.1}
  #allocation0 [shape = 'u32[]', space=smem, size = 0x4, offset = 0x4, fixed_abs, tag = 'smem constant byte address 0x4 - core index']
  #allocation1 [shape = 'u32[144,128]{1,0:T(1,128)}', space=vmem, size = 0x12000, scoped, tag = 'internal scratch']
  %s0 = inlined_call_operand.vmem [shape: bf16[2,4,384], index: 0, kind: input, shape index: {}]
  %s1 = inlined_call_operand.vmem [shape: bf16[9,8,4], index: 1, kind: input, shape index: {}]
  %s2 = inlined_call_operand.vmem [shape: f32[8,1], index: 2, kind: input, shape index: {}]
  %s3 = inlined_call_operand.hbm [shape: f32[2,8,256], index: 3, kind: output, shape index: {}]
  %s4 = sld [smem:[#allocation0]]
  $region22: #{tpu_custom_call.1} parent=0
    _
  %s6 = ssub.s32 1, %s4
  %s7 = scalar_select 0, %s6, %s4
  $region1: #{tpu_custom_call.1} parent=0
    #allocation2 [shape = 'u8[16384]{0}', space=vmem, size = 0x4000, scoped, tag = 'output window, operand 0, single buffered']
    #allocation3 [shape = 's32[1]{0}', space=sflag, size = 0x4, scoped, tag = 'scoped memory for tpu_custom_call.1']
    %8 = vsyncpa [#allocation3], 0
    // Predicated region
    $region2: #{tpu_custom_call.1} parent=1 // pred_check
      _
    $region3: #{tpu_custom_call.1} parent=1 // pred_check_branch
      %10 = sbr.rel (0) target = $region5
    $region4: #{tpu_custom_call.1} parent=1 // pred_region
      _
    $region5: #{tpu_custom_call.1} parent=1 // pred_fallthru
      _
    // Predicated region
    $region6: #{tpu_custom_call.1} parent=1 // pred_check
      _
    $region7: #{tpu_custom_call.1} parent=1 // pred_check_branch
      %12 = sbr.rel (0) target = $region9
    $region8: #{tpu_custom_call.1} parent=1 // pred_region
      _
    $region9: #{tpu_custom_call.1} parent=1 // pred_fallthru
      _
    // Predicated region
    $region10: #{tpu_custom_call.1} parent=1 // pred_check
      _
    $region11: #{tpu_custom_call.1} parent=1 // pred_check_branch
      %14 = sbr.rel (0) target = $region13
    $region12: #{tpu_custom_call.1} parent=1 // pred_region
      _
    $region13: #{tpu_custom_call.1} parent=1 // pred_fallthru
      _
    %v16 = vld [vmem:[%s2] sm:$0xff]
    %v17 = vld [vmem:[%s0] sm:$0xf]
    %v18 = vld [vmem:[%s1] sm:$0xf]
    %v19 = vld [vmem:[%s0] sm:$0x3f]
    %s20 = scalar_lea.vmem %s1, 4
    %v21 = vld [vmem:[%s20] sm:$0xf]
    %v23 = vcombine.high %v19, %v19
    %v25 = vunpack.c.l.s4 1983009808
    %v26 = vunpack.c.0.s8 %v25
    %v27 = vlaneseq
    %v28 = vshrl.u32 %v27, 7
    %v29 = vsub.s32 %v26, %v28
    %v30 = vrot.slane %v19, %v29
    %v32 = vunpack.c.l.s4 1983009808
    %v33 = vunpack.c.0.s8 %v32
    %v34 = vlaneseq
    %v35 = vshrl.u32 %v34, 7
    %v36 = vsub.s32 %v33, %v35
    %v37 = vrot.slane %v23, %v36
    %v38 = vcombine.high %v30, %v30
    %39 = vrot.lane.b32.xlu0 %v30, 127
    %v40 = vpop.permute.xlu0 %39
    %41 = vrot.lane.b32.xlu0 %v38, 127
    %v42 = vpop.permute.xlu0 %41
    %43 = vrot.lane.b32.xlu0 %v37, 127
    %v44 = vpop.permute.xlu0 %43
    %vm45 = vcmask 1039360
    %v46 = vsel %vm45, %v40, %v42
    %v47 = vsel %vm45, %v42, %v44
    %vm48 = vcmask 31744
    %v50 = vsel %vm48, %v21, 0
    %vm52 = vcmask 1041408
    %v54 = vsel %vm52, %v46, 0
    %v57 = vsel %vm52, %v47, 0
    %59 = vmatprep.subr.bf16.mxu0 %v57
    %60 = vmatpush1.bf16.msra.mxu0 %v54
    %61 = vmatprep.subr.bf16.mxu0 0
    %62 = vmatpush1.bf16.msra.mxu0 0
    %63 = vmatprep.subr.bf16.mxu0 0
    %64 = vmatpush1.bf16.msra.mxu0 0
    %65 = vmatprep.subr.bf16.mxu0 0
    %66 = vmatpush1.bf16.msra.mxu0 0
    %67 = vmatprep.subr.bf16.mxu0 0
    %68 = vmatpush1.bf16.msra.mxu0 0
    %69 = vmatprep.subr.bf16.mxu0 0
    %70 = vmatpush1.bf16.msra.mxu0 0
    %71 = vmatprep.subr.bf16.mxu0 0
    %72 = vmatpush1.bf16.msra.mxu0 0
    %73 = vmatprep.subr.bf16.mxu0 0
    %74 = vmatpush1.bf16.msra.mxu0 0
    %75 = vmatprep.subr.bf16.mxu0 0
    %76 = vmatpush1.bf16.msra.mxu0 0
    %77 = vmatprep.subr.bf16.mxu0 0
    %78 = vmatpush1.bf16.msra.mxu0 0
    %79 = vmatprep.subr.bf16.mxu0 0
    %80 = vmatpush1.bf16.msra.mxu0 0
    %81 = vmatprep.subr.bf16.mxu0 0
    %82 = vmatpush1.bf16.msra.mxu0 0
    %83 = vmatprep.subr.bf16.mxu0 0
    %84 = vmatpush1.bf16.msra.mxu0 0
    %85 = vmatprep.subr.bf16.mxu0 0
    %86 = vmatpush1.bf16.msra.mxu0 0
    %87 = vmatprep.subr.bf16.mxu0 0
    %88 = vmatpush1.bf16.msra.mxu0 0
    %89 = vmatprep.subr.bf16.mxu0 0
    %90 = vmatpush1.bf16.msra.mxu0 0
    %91 = vmatprep.mubr.bf16.mxu0 0
    %92 = vmatmul.mubr.bf16.gmra.mrb[0].mxu0 %v50
    %v93 = vpop.f32.mrb[0].mxu0
    %v94 = vadd.f32 0.0, %v93
    %v95 = vpop.f32.mrb[0].mxu0
    %v96 = vadd.f32 0.0, %v95
    %v97 = vpop.f32.mrb[0].mxu0
    %v98 = vpop.f32.mrb[0].mxu0
    %99 = vdwg.mxu0
    %v102 = vunpack.c.l.s4 1983009808
    %v103 = vunpack.c.0.s8 %v102
    %v104 = vlaneseq
    %v105 = vshrl.u32 %v104, 7
    %v106 = vsub.s32 %v103, %v105
    %v107 = vrot.slane %v17, %v106
    %v108 = vcombine.high %v107, %v107
    %v110 = vsel %vm48, %v18, 0
    %v113 = vsel %vm52, %v107, 0
    %v116 = vsel %vm52, %v108, 0
    %118 = vmatprep.subr.bf16.mxu0 %v116
    %119 = vmatpush1.bf16.msra.mxu0 %v113
    %120 = vmatprep.subr.bf16.mxu0 0
    %121 = vmatpush1.bf16.msra.mxu0 0
    %122 = vmatprep.subr.bf16.mxu0 0
    %123 = vmatpush1.bf16.msra.mxu0 0
    %124 = vmatprep.subr.bf16.mxu0 0
    %125 = vmatpush1.bf16.msra.mxu0 0
    %126 = vmatprep.subr.bf16.mxu0 0
    %127 = vmatpush1.bf16.msra.mxu0 0
    %128 = vmatprep.subr.bf16.mxu0 0
    %129 = vmatpush1.bf16.msra.mxu0 0
    %130 = vmatprep.subr.bf16.mxu0 0
    %131 = vmatpush1.bf16.msra.mxu0 0
    %132 = vmatprep.subr.bf16.mxu0 0
    %133 = vmatpush1.bf16.msra.mxu0 0
    %134 = vmatprep.subr.bf16.mxu0 0
    %135 = vmatpush1.bf16.msra.mxu0 0
    %136 = vmatprep.subr.bf16.mxu0 0
    %137 = vmatpush1.bf16.msra.mxu0 0
    %138 = vmatprep.subr.bf16.mxu0 0
    %139 = vmatpush1.bf16.msra.mxu0 0
    %140 = vmatprep.subr.bf16.mxu0 0
    %141 = vmatpush1.bf16.msra.mxu0 0
    %142 = vmatprep.subr.bf16.mxu0 0
    %143 = vmatpush1.bf16.msra.mxu0 0
    %144 = vmatprep.subr.bf16.mxu0 0
    %145 = vmatpush1.bf16.msra.mxu0 0
    %146 = vmatprep.subr.bf16.mxu0 0
    %147 = vmatpush1.bf16.msra.mxu0 0
    %148 = vmatprep.subr.bf16.mxu0 0
    %149 = vmatpush1.bf16.msra.mxu0 0
    %150 = vmatprep.mubr.bf16.mxu0 0
    %151 = vmatmul.mubr.bf16.gmra.mrb[0].mxu0 %v110
    %v152 = vpop.f32.mrb[0].mxu0
    %v153 = vadd.f32 %v94, %v152
    %v154 = vpop.f32.mrb[0].mxu0
    %v155 = vadd.f32 %v96, %v154
    %v156 = vpop.f32.mrb[0].mxu0
    %v157 = vpop.f32.mrb[0].mxu0
    %158 = vdwg.mxu0
    %v159 = vld [vmem:[%s0] sm:$0x3f]
    %s160 = scalar_lea.vmem %s1, 8
    %v161 = vld [vmem:[%s160] sm:$0xf]
    %v163 = vcombine.high %v159, %v159
    %v165 = vunpack.c.l.s4 1983009808
    %v166 = vunpack.c.0.s8 %v165
    %v167 = vlaneseq
    %v168 = vshrl.u32 %v167, 7
    %v169 = vsub.s32 %v166, %v168
    %v170 = vrot.slane %v159, %v169
    %v172 = vunpack.c.l.s4 1983009808
    %v173 = vunpack.c.0.s8 %v172
    %v174 = vlaneseq
    %v175 = vshrl.u32 %v174, 7
    %v176 = vsub.s32 %v173, %v175
    %v177 = vrot.slane %v163, %v176
    %v178 = vcombine.high %v170, %v170
    %179 = vrot.lane.b32.xlu0 %v170, 126
    %v180 = vpop.permute.xlu0 %179
    %181 = vrot.lane.b32.xlu0 %v178, 126
    %v182 = vpop.permute.xlu0 %181
    %183 = vrot.lane.b32.xlu0 %v177, 126
    %v184 = vpop.permute.xlu0 %183
    %vm185 = vcmask 1031168
    %v186 = vsel %vm185, %v180, %v182
    %v187 = vsel %vm185, %v182, %v184
    %v189 = vsel %vm48, %v161, 0
    %v192 = vsel %vm52, %v186, 0
    %v195 = vsel %vm52, %v187, 0
    %197 = vmatprep.subr.bf16.mxu0 %v195
    %198 = vmatpush1.bf16.msra.mxu0 %v192
    %199 = vmatprep.subr.bf16.mxu0 0
    %200 = vmatpush1.bf16.msra.mxu0 0
    %201 = vmatprep.subr.bf16.mxu0 0
    %202 = vmatpush1.bf16.msra.mxu0 0
    %203 = vmatprep.subr.bf16.mxu0 0
    %204 = vmatpush1.bf16.msra.mxu0 0
    %205 = vmatprep.subr.bf16.mxu0 0
    %206 = vmatpush1.bf16.msra.mxu0 0
    %207 = vmatprep.subr.bf16.mxu0 0
    %208 = vmatpush1.bf16.msra.mxu0 0
    %209 = vmatprep.subr.bf16.mxu0 0
    %210 = vmatpush1.bf16.msra.mxu0 0
    %211 = vmatprep.subr.bf16.mxu0 0
    %212 = vmatpush1.bf16.msra.mxu0 0
    %213 = vmatprep.subr.bf16.mxu0 0
    %214 = vmatpush1.bf16.msra.mxu0 0
    %215 = vmatprep.subr.bf16.mxu0 0
    %216 = vmatpush1.bf16.msra.mxu0 0
    %217 = vmatprep.subr.bf16.mxu0 0
    %218 = vmatpush1.bf16.msra.mxu0 0
    %219 = vmatprep.subr.bf16.mxu0 0
    %220 = vmatpush1.bf16.msra.mxu0 0
    %221 = vmatprep.subr.bf16.mxu0 0
    %222 = vmatpush1.bf16.msra.mxu0 0
    %223 = vmatprep.subr.bf16.mxu0 0
    %224 = vmatpush1.bf16.msra.mxu0 0
    %225 = vmatprep.subr.bf16.mxu0 0
    %226 = vmatpush1.bf16.msra.mxu0 0
    %227 = vmatprep.subr.bf16.mxu0 0
    %228 = vmatpush1.bf16.msra.mxu0 0
    %229 = vmatprep.mubr.bf16.mxu0 0
    %230 = vmatmul.mubr.bf16.gmra.mrb[0].mxu0 %v189
    %v231 = vpop.f32.mrb[0].mxu0
    %v232 = vadd.f32 0.0, %v231
    %v233 = vpop.f32.mrb[0].mxu0
    %v234 = vadd.f32 0.0, %v233
    %v235 = vpop.f32.mrb[0].mxu0
    %v236 = vpop.f32.mrb[0].mxu0
    %237 = vdwg.mxu0
    %v238 = vadd.f32 %v153, %v232
    %v239 = vadd.f32 %v155, %v234
    %v240 = vld [vmem:[%s0] sm:$0x3f]
    %s241 = scalar_lea.vmem %s1, 12
    %v242 = vld [vmem:[%s241] sm:$0xf]
    %v244 = vcombine.high %v240, %v240
    %v246 = vunpack.c.l.s4 1983009808
    %v247 = vunpack.c.0.s8 %v246
    %v248 = vlaneseq
    %v249 = vshrl.u32 %v248, 7
    %v250 = vsub.s32 %v247, %v249
    %v251 = vrot.slane %v240, %v250
    %v253 = vunpack.c.l.s4 1983009808
    %v254 = vunpack.c.0.s8 %v253
    %v255 = vlaneseq
    %v256 = vshrl.u32 %v255, 7
    %v257 = vsub.s32 %v254, %v256
    %v258 = vrot.slane %v244, %v257
    %v259 = vcombine.high %v251, %v251
    %260 = vrot.lane.b32.xlu0 %v251, 112
    %v261 = vpop.permute.xlu0 %260
    %262 = vrot.lane.b32.xlu0 %v259, 112
    %v263 = vpop.permute.xlu0 %262
    %264 = vrot.lane.b32.xlu0 %v258, 112
    %v265 = vpop.permute.xlu0 %264
    %vm266 = vcmask 916480
    %v267 = vsel %vm266, %v261, %v263
    %v268 = vsel %vm266, %v263, %v265
    %v270 = vsel %vm48, %v242, 0
    %v273 = vsel %vm52, %v267, 0
    %v276 = vsel %vm52, %v268, 0
    %278 = vmatprep.subr.bf16.mxu0 %v276
    %279 = vmatpush1.bf16.msra.mxu0 %v273
    %280 = vmatprep.subr.bf16.mxu0 0
    %281 = vmatpush1.bf16.msra.mxu0 0
    %282 = vmatprep.subr.bf16.mxu0 0
    %283 = vmatpush1.bf16.msra.mxu0 0
    %284 = vmatprep.subr.bf16.mxu0 0
    %285 = vmatpush1.bf16.msra.mxu0 0
    %286 = vmatprep.subr.bf16.mxu0 0
    %287 = vmatpush1.bf16.msra.mxu0 0
    %288 = vmatprep.subr.bf16.mxu0 0
    %289 = vmatpush1.bf16.msra.mxu0 0
    %290 = vmatprep.subr.bf16.mxu0 0
    %291 = vmatpush1.bf16.msra.mxu0 0
    %292 = vmatprep.subr.bf16.mxu0 0
    %293 = vmatpush1.bf16.msra.mxu0 0
    %294 = vmatprep.subr.bf16.mxu0 0
    %295 = vmatpush1.bf16.msra.mxu0 0
    %296 = vmatprep.subr.bf16.mxu0 0
    %297 = vmatpush1.bf16.msra.mxu0 0
    %298 = vmatprep.subr.bf16.mxu0 0
    %299 = vmatpush1.bf16.msra.mxu0 0
    %300 = vmatprep.subr.bf16.mxu0 0
    %301 = vmatpush1.bf16.msra.mxu0 0
    %302 = vmatprep.subr.bf16.mxu0 0
    %303 = vmatpush1.bf16.msra.mxu0 0
    %304 = vmatprep.subr.bf16.mxu0 0
    %305 = vmatpush1.bf16.msra.mxu0 0
    %306 = vmatprep.subr.bf16.mxu0 0
    %307 = vmatpush1.bf16.msra.mxu0 0
    %308 = vmatprep.subr.bf16.mxu0 0
    %309 = vmatpush1.bf16.msra.mxu0 0
    %310 = vmatprep.mubr.bf16.mxu0 0
    %311 = vmatmul.mubr.bf16.gmra.mrb[0].mxu0 %v270
    %v312 = vpop.f32.mrb[0].mxu0
    %v313 = vadd.f32 0.0, %v312
    %v314 = vpop.f32.mrb[0].mxu0
    %v315 = vadd.f32 0.0, %v314
    %v316 = vpop.f32.mrb[0].mxu0
    %v317 = vpop.f32.mrb[0].mxu0
    %318 = vdwg.mxu0
    %v319 = vadd.f32 %v238, %v313
    %v320 = vadd.f32 %v239, %v315
    %v321 = vld [vmem:[%s0] sm:$0x3f]
    %s322 = scalar_lea.vmem %s1, 16
    %v323 = vld [vmem:[%s322] sm:$0xf]
    %v325 = vcombine.high %v321, %v321
    %v327 = vunpack.c.l.s4 1983009808
    %v328 = vunpack.c.0.s8 %v327
    %v329 = vlaneseq
    %v330 = vshrl.u32 %v329, 7
    %v331 = vsub.s32 %v328, %v330
    %v332 = vrot.slane %v321, %v331
    %v334 = vunpack.c.l.s4 1983009808
    %v335 = vunpack.c.0.s8 %v334
    %v336 = vlaneseq
    %v337 = vshrl.u32 %v336, 7
    %v338 = vsub.s32 %v335, %v337
    %v339 = vrot.slane %v325, %v338
    %v340 = vcombine.high %v332, %v332
    %341 = vrot.lane.b32.xlu0 %v332, 111
    %v342 = vpop.permute.xlu0 %341
    %343 = vrot.lane.b32.xlu0 %v340, 111
    %v344 = vpop.permute.xlu0 %343
    %345 = vrot.lane.b32.xlu0 %v339, 111
    %v346 = vpop.permute.xlu0 %345
    %vm347 = vcmask 908288
    %v348 = vsel %vm347, %v342, %v344
    %v349 = vsel %vm347, %v344, %v346
    %v351 = vsel %vm48, %v323, 0
    %v354 = vsel %vm52, %v348, 0
    %v357 = vsel %vm52, %v349, 0
    %359 = vmatprep.subr.bf16.mxu0 %v357
    %360 = vmatpush1.bf16.msra.mxu0 %v354
    %361 = vmatprep.subr.bf16.mxu0 0
    %362 = vmatpush1.bf16.msra.mxu0 0
    %363 = vmatprep.subr.bf16.mxu0 0
    %364 = vmatpush1.bf16.msra.mxu0 0
    %365 = vmatprep.subr.bf16.mxu0 0
    %366 = vmatpush1.bf16.msra.mxu0 0
    %367 = vmatprep.subr.bf16.mxu0 0
    %368 = vmatpush1.bf16.msra.mxu0 0
    %369 = vmatprep.subr.bf16.mxu0 0
    %370 = vmatpush1.bf16.msra.mxu0 0
    %371 = vmatprep.subr.bf16.mxu0 0
    %372 = vmatpush1.bf16.msra.mxu0 0
    %373 = vmatprep.subr.bf16.mxu0 0
    %374 = vmatpush1.bf16.msra.mxu0 0
    %375 = vmatprep.subr.bf16.mxu0 0
    %376 = vmatpush1.bf16.msra.mxu0 0
    %377 = vmatprep.subr.bf16.mxu0 0
    %378 = vmatpush1.bf16.msra.mxu0 0
    %379 = vmatprep.subr.bf16.mxu0 0
    %380 = vmatpush1.bf16.msra.mxu0 0
    %381 = vmatprep.subr.bf16.mxu0 0
    %382 = vmatpush1.bf16.msra.mxu0 0
    %383 = vmatprep.subr.bf16.mxu0 0
    %384 = vmatpush1.bf16.msra.mxu0 0
    %385 = vmatprep.subr.bf16.mxu0 0
    %386 = vmatpush1.bf16.msra.mxu0 0
    %387 = vmatprep.subr.bf16.mxu0 0
    %388 = vmatpush1.bf16.msra.mxu0 0
    %389 = vmatprep.subr.bf16.mxu0 0
    %390 = vmatpush1.bf16.msra.mxu0 0
    %391 = vmatprep.mubr.bf16.mxu0 0
    %392 = vmatmul.mubr.bf16.gmra.mrb[0].mxu0 %v351
    %v393 = vpop.f32.mrb[0].mxu0
    %v394 = vadd.f32 0.0, %v393
    %v395 = vpop.f32.mrb[0].mxu0
    %v396 = vadd.f32 0.0, %v395
    %v397 = vpop.f32.mrb[0].mxu0
    %v398 = vpop.f32.mrb[0].mxu0
    %399 = vdwg.mxu0
    %v400 = vadd.f32 %v319, %v394
    %v401 = vadd.f32 %v320, %v396
    %v402 = vld [vmem:[%s0] sm:$0x3f]
    %s403 = scalar_lea.vmem %s1, 20
    %v404 = vld [vmem:[%s403] sm:$0xf]
    %v406 = vcombine.high %v402, %v402
    %v408 = vunpack.c.l.s4 1983009808
    %v409 = vunpack.c.0.s8 %v408
    %v410 = vlaneseq
    %v411 = vshrl.u32 %v410, 7
    %v412 = vsub.s32 %v409, %v411
    %v413 = vrot.slane %v402, %v412
    %v415 = vunpack.c.l.s4 1983009808
    %v416 = vunpack.c.0.s8 %v415
    %v417 = vlaneseq
    %v418 = vshrl.u32 %v417, 7
    %v419 = vsub.s32 %v416, %v418
    %v420 = vrot.slane %v406, %v419
    %v421 = vcombine.high %v413, %v413
    %422 = vrot.lane.b32.xlu0 %v413, 110
    %v423 = vpop.permute.xlu0 %422
    %424 = vrot.lane.b32.xlu0 %v421, 110
    %v425 = vpop.permute.xlu0 %424
    %426 = vrot.lane.b32.xlu0 %v420, 110
    %v427 = vpop.permute.xlu0 %426
    %vm428 = vcmask 900096
    %v429 = vsel %vm428, %v423, %v425
    %v430 = vsel %vm428, %v425, %v427
    %v432 = vsel %vm48, %v404, 0
    %v435 = vsel %vm52, %v429, 0
    %v438 = vsel %vm52, %v430, 0
    %440 = vmatprep.subr.bf16.mxu0 %v438
    %441 = vmatpush1.bf16.msra.mxu0 %v435
    %442 = vmatprep.subr.bf16.mxu0 0
    %443 = vmatpush1.bf16.msra.mxu0 0
    %444 = vmatprep.subr.bf16.mxu0 0
    %445 = vmatpush1.bf16.msra.mxu0 0
    %446 = vmatprep.subr.bf16.mxu0 0
    %447 = vmatpush1.bf16.msra.mxu0 0
    %448 = vmatprep.subr.bf16.mxu0 0
    %449 = vmatpush1.bf16.msra.mxu0 0
    %450 = vmatprep.subr.bf16.mxu0 0
    %451 = vmatpush1.bf16.msra.mxu0 0
    %452 = vmatprep.subr.bf16.mxu0 0
    %453 = vmatpush1.bf16.msra.mxu0 0
    %454 = vmatprep.subr.bf16.mxu0 0
    %455 = vmatpush1.bf16.msra.mxu0 0
    %456 = vmatprep.subr.bf16.mxu0 0
    %457 = vmatpush1.bf16.msra.mxu0 0
    %458 = vmatprep.subr.bf16.mxu0 0
    %459 = vmatpush1.bf16.msra.mxu0 0
    %460 = vmatprep.subr.bf16.mxu0 0
    %461 = vmatpush1.bf16.msra.mxu0 0
    %462 = vmatprep.subr.bf16.mxu0 0
    %463 = vmatpush1.bf16.msra.mxu0 0
    %464 = vmatprep.subr.bf16.mxu0 0
    %465 = vmatpush1.bf16.msra.mxu0 0
    %466 = vmatprep.subr.bf16.mxu0 0
    %467 = vmatpush1.bf16.msra.mxu0 0
    %468 = vmatprep.subr.bf16.mxu0 0
    %469 = vmatpush1.bf16.msra.mxu0 0
    %470 = vmatprep.subr.bf16.mxu0 0
    %471 = vmatpush1.bf16.msra.mxu0 0
    %472 = vmatprep.mubr.bf16.mxu0 0
    %473 = vmatmul.mubr.bf16.gmra.mrb[0].mxu0 %v432
    %v474 = vpop.f32.mrb[0].mxu0
    %v475 = vadd.f32 0.0, %v474
    %v476 = vpop.f32.mrb[0].mxu0
    %v477 = vadd.f32 0.0, %v476
    %v478 = vpop.f32.mrb[0].mxu0
    %v479 = vpop.f32.mrb[0].mxu0
    %480 = vdwg.mxu0
    %v481 = vadd.f32 %v400, %v475
    %v482 = vadd.f32 %v401, %v477
    %v483 = vld [vmem:[%s0] sm:$0x3f]
    %s484 = scalar_lea.vmem %s1, 24
    %v485 = vld [vmem:[%s484] sm:$0xf]
    %v487 = vcombine.high %v483, %v483
    %v489 = vunpack.c.l.s4 1983009808
    %v490 = vunpack.c.0.s8 %v489
    %v491 = vlaneseq
    %v492 = vshrl.u32 %v491, 7
    %v493 = vsub.s32 %v490, %v492
    %v494 = vrot.slane %v483, %v493
    %v496 = vunpack.c.l.s4 1983009808
    %v497 = vunpack.c.0.s8 %v496
    %v498 = vlaneseq
    %v499 = vshrl.u32 %v498, 7
    %v500 = vsub.s32 %v497, %v499
    %v501 = vrot.slane %v487, %v500
    %v502 = vcombine.high %v494, %v494
    %503 = vrot.lane.b32.xlu0 %v494, 96
    %v504 = vpop.permute.xlu0 %503
    %505 = vrot.lane.b32.xlu0 %v502, 96
    %v506 = vpop.permute.xlu0 %505
    %507 = vrot.lane.b32.xlu0 %v501, 96
    %v508 = vpop.permute.xlu0 %507
    %vm509 = vcmask 785408
    %v510 = vsel %vm509, %v504, %v506
    %v511 = vsel %vm509, %v506, %v508
    %v513 = vsel %vm48, %v485, 0
    %v516 = vsel %vm52, %v510, 0
    %v519 = vsel %vm52, %v511, 0
    %521 = vmatprep.subr.bf16.mxu0 %v519
    %522 = vmatpush1.bf16.msra.mxu0 %v516
    %523 = vmatprep.subr.bf16.mxu0 0
    %524 = vmatpush1.bf16.msra.mxu0 0
    %525 = vmatprep.subr.bf16.mxu0 0
    %526 = vmatpush1.bf16.msra.mxu0 0
    %527 = vmatprep.subr.bf16.mxu0 0
    %528 = vmatpush1.bf16.msra.mxu0 0
    %529 = vmatprep.subr.bf16.mxu0 0
    %530 = vmatpush1.bf16.msra.mxu0 0
    %531 = vmatprep.subr.bf16.mxu0 0
    %532 = vmatpush1.bf16.msra.mxu0 0
    %533 = vmatprep.subr.bf16.mxu0 0
    %534 = vmatpush1.bf16.msra.mxu0 0
    %535 = vmatprep.subr.bf16.mxu0 0
    %536 = vmatpush1.bf16.msra.mxu0 0
    %537 = vmatprep.subr.bf16.mxu0 0
    %538 = vmatpush1.bf16.msra.mxu0 0
    %539 = vmatprep.subr.bf16.mxu0 0
    %540 = vmatpush1.bf16.msra.mxu0 0
    %541 = vmatprep.subr.bf16.mxu0 0
    %542 = vmatpush1.bf16.msra.mxu0 0
    %543 = vmatprep.subr.bf16.mxu0 0
    %544 = vmatpush1.bf16.msra.mxu0 0
    %545 = vmatprep.subr.bf16.mxu0 0
    %546 = vmatpush1.bf16.msra.mxu0 0
    %547 = vmatprep.subr.bf16.mxu0 0
    %548 = vmatpush1.bf16.msra.mxu0 0
    %549 = vmatprep.subr.bf16.mxu0 0
    %550 = vmatpush1.bf16.msra.mxu0 0
    %551 = vmatprep.subr.bf16.mxu0 0
    %552 = vmatpush1.bf16.msra.mxu0 0
    %553 = vmatprep.mubr.bf16.mxu0 0
    %554 = vmatmul.mubr.bf16.gmra.mrb[0].mxu0 %v513
    %v555 = vpop.f32.mrb[0].mxu0
    %v556 = vadd.f32 0.0, %v555
    %v557 = vpop.f32.mrb[0].mxu0
    %v558 = vadd.f32 0.0, %v557
    %v559 = vpop.f32.mrb[0].mxu0
    %v560 = vpop.f32.mrb[0].mxu0
    %561 = vdwg.mxu0
    %v562 = vadd.f32 %v481, %v556
    %v563 = vadd.f32 %v482, %v558
    %v564 = vld [vmem:[%s0] sm:$0x3f]
    %s565 = scalar_lea.vmem %s1, 28
    %v566 = vld [vmem:[%s565] sm:$0xf]
    %v568 = vcombine.high %v564, %v564
    %v570 = vunpack.c.l.s4 1983009808
    %v571 = vunpack.c.0.s8 %v570
    %v572 = vlaneseq
    %v573 = vshrl.u32 %v572, 7
    %v574 = vsub.s32 %v571, %v573
    %v575 = vrot.slane %v564, %v574
    %v577 = vunpack.c.l.s4 1983009808
    %v578 = vunpack.c.0.s8 %v577
    %v579 = vlaneseq
    %v580 = vshrl.u32 %v579, 7
    %v581 = vsub.s32 %v578, %v580
    %v582 = vrot.slane %v568, %v581
    %v583 = vcombine.high %v575, %v575
    %584 = vrot.lane.b32.xlu0 %v575, 95
    %v585 = vpop.permute.xlu0 %584
    %586 = vrot.lane.b32.xlu0 %v583, 95
    %v587 = vpop.permute.xlu0 %586
    %588 = vrot.lane.b32.xlu0 %v582, 95
    %v589 = vpop.permute.xlu0 %588
    %vm590 = vcmask 777216
    %v591 = vsel %vm590, %v585, %v587
    %v592 = vsel %vm590, %v587, %v589
    %v594 = vsel %vm48, %v566, 0
    %v597 = vsel %vm52, %v591, 0
    %v600 = vsel %vm52, %v592, 0
    %602 = vmatprep.subr.bf16.mxu0 %v600
    %603 = vmatpush1.bf16.msra.mxu0 %v597
    %604 = vmatprep.subr.bf16.mxu0 0
    %605 = vmatpush1.bf16.msra.mxu0 0
    %606 = vmatprep.subr.bf16.mxu0 0
    %607 = vmatpush1.bf16.msra.mxu0 0
    %608 = vmatprep.subr.bf16.mxu0 0
    %609 = vmatpush1.bf16.msra.mxu0 0
    %610 = vmatprep.subr.bf16.mxu0 0
    %611 = vmatpush1.bf16.msra.mxu0 0
    %612 = vmatprep.subr.bf16.mxu0 0
    %613 = vmatpush1.bf16.msra.mxu0 0
    %614 = vmatprep.subr.bf16.mxu0 0
    %615 = vmatpush1.bf16.msra.mxu0 0
    %616 = vmatprep.subr.bf16.mxu0 0
    %617 = vmatpush1.bf16.msra.mxu0 0
    %618 = vmatprep.subr.bf16.mxu0 0
    %619 = vmatpush1.bf16.msra.mxu0 0
    %620 = vmatprep.subr.bf16.mxu0 0
    %621 = vmatpush1.bf16.msra.mxu0 0
    %622 = vmatprep.subr.bf16.mxu0 0
    %623 = vmatpush1.bf16.msra.mxu0 0
    %624 = vmatprep.subr.bf16.mxu0 0
    %625 = vmatpush1.bf16.msra.mxu0 0
    %626 = vmatprep.subr.bf16.mxu0 0
    %627 = vmatpush1.bf16.msra.mxu0 0
    %628 = vmatprep.subr.bf16.mxu0 0
    %629 = vmatpush1.bf16.msra.mxu0 0
    %630 = vmatprep.subr.bf16.mxu0 0
    %631 = vmatpush1.bf16.msra.mxu0 0
    %632 = vmatprep.subr.bf16.mxu0 0
    %633 = vmatpush1.bf16.msra.mxu0 0
    %634 = vmatprep.mubr.bf16.mxu0 0
    %635 = vmatmul.mubr.bf16.gmra.mrb[0].mxu0 %v594
    %v636 = vpop.f32.mrb[0].mxu0
    %v637 = vadd.f32 0.0, %v636
    %v638 = vpop.f32.mrb[0].mxu0
    %v639 = vadd.f32 0.0, %v638
    %v640 = vpop.f32.mrb[0].mxu0
    %v641 = vpop.f32.mrb[0].mxu0
    %642 = vdwg.mxu0
    %v643 = vadd.f32 %v562, %v637
    %v644 = vadd.f32 %v563, %v639
    %v645 = vld [vmem:[%s0] sm:$0x3f]
    %s646 = scalar_lea.vmem %s1, 32
    %v647 = vld [vmem:[%s646] sm:$0xf]
    %v649 = vcombine.high %v645, %v645
    %v651 = vunpack.c.l.s4 1983009808
    %v652 = vunpack.c.0.s8 %v651
    %v653 = vlaneseq
    %v654 = vshrl.u32 %v653, 7
    %v655 = vsub.s32 %v652, %v654
    %v656 = vrot.slane %v645, %v655
    %v658 = vunpack.c.l.s4 1983009808
    %v659 = vunpack.c.0.s8 %v658
    %v660 = vlaneseq
    %v661 = vshrl.u32 %v660, 7
    %v662 = vsub.s32 %v659, %v661
    %v663 = vrot.slane %v649, %v662
    %v664 = vcombine.high %v656, %v656
    %665 = vrot.lane.b32.xlu0 %v656, 94
    %v666 = vpop.permute.xlu0 %665
    %667 = vrot.lane.b32.xlu0 %v664, 94
    %v668 = vpop.permute.xlu0 %667
    %669 = vrot.lane.b32.xlu0 %v663, 94
    %v670 = vpop.permute.xlu0 %669
    %vm671 = vcmask 769024
    %v672 = vsel %vm671, %v666, %v668
    %v673 = vsel %vm671, %v668, %v670
    %v675 = vsel %vm48, %v647, 0
    %v678 = vsel %vm52, %v672, 0
    %v681 = vsel %vm52, %v673, 0
    %683 = vmatprep.subr.bf16.mxu0 %v681
    %684 = vmatpush1.bf16.msra.mxu0 %v678
    %685 = vmatprep.subr.bf16.mxu0 0
    %686 = vmatpush1.bf16.msra.mxu0 0
    %687 = vmatprep.subr.bf16.mxu0 0
    %688 = vmatpush1.bf16.msra.mxu0 0
    %689 = vmatprep.subr.bf16.mxu0 0
    %690 = vmatpush1.bf16.msra.mxu0 0
    %691 = vmatprep.subr.bf16.mxu0 0
    %692 = vmatpush1.bf16.msra.mxu0 0
    %693 = vmatprep.subr.bf16.mxu0 0
    %694 = vmatpush1.bf16.msra.mxu0 0
    %695 = vmatprep.subr.bf16.mxu0 0
    %696 = vmatpush1.bf16.msra.mxu0 0
    %697 = vmatprep.subr.bf16.mxu0 0
    %698 = vmatpush1.bf16.msra.mxu0 0
    %699 = vmatprep.subr.bf16.mxu0 0
    %700 = vmatpush1.bf16.msra.mxu0 0
    %701 = vmatprep.subr.bf16.mxu0 0
    %702 = vmatpush1.bf16.msra.mxu0 0
    %703 = vmatprep.subr.bf16.mxu0 0
    %704 = vmatpush1.bf16.msra.mxu0 0
    %705 = vmatprep.subr.bf16.mxu0 0
    %706 = vmatpush1.bf16.msra.mxu0 0
    %707 = vmatprep.subr.bf16.mxu0 0
    %708 = vmatpush1.bf16.msra.mxu0 0
    %709 = vmatprep.subr.bf16.mxu0 0
    %710 = vmatpush1.bf16.msra.mxu0 0
    %711 = vmatprep.subr.bf16.mxu0 0
    %712 = vmatpush1.bf16.msra.mxu0 0
    %713 = vmatprep.subr.bf16.mxu0 0
    %714 = vmatpush1.bf16.msra.mxu0 0
    %715 = vmatprep.mubr.bf16.mxu0 0
    %716 = vmatmul.mubr.bf16.gmra.mrb[0].mxu0 %v675
    %v717 = vpop.f32.mrb[0].mxu0
    %v718 = vadd.f32 0.0, %v717
    %v719 = vpop.f32.mrb[0].mxu0
    %v720 = vadd.f32 0.0, %v719
    %v721 = vpop.f32.mrb[0].mxu0
    %v722 = vpop.f32.mrb[0].mxu0
    %723 = vdwg.mxu0
    %v724 = vadd.f32 %v643, %v718
    %v725 = vadd.f32 %v644, %v720
    %727 = vset.pattern.permute.xlu0 0
    %728 = vperm.xlu0 %727, %v16
    %v729 = vpop.permute.xlu0 %728
    %v731 = vadd.f32 %v724, %v729
    %v732 = vadd.f32 %v725, %v729
    %733 = vst [vmem:[#allocation2] sm:$0xff] %v731
    %734 = vst [vmem:[#allocation2 + $0x8] sm:$0xff] %v732
    %s735 = scalar_lea.vmem %s0, 6
    %v736 = vld [vmem:[%s735] sm:$0xf]
    %v737 = vld [vmem:[%s1] sm:$0xf]
    %v738 = vld [vmem:[%s735] sm:$0x3f]
    %v739 = vld [vmem:[%s20] sm:$0xf]
    %v741 = vcombine.high %v738, %v738
    %v743 = vunpack.c.l.s4 1983009808
    %v744 = vunpack.c.0.s8 %v743
    %v745 = vlaneseq
    %v746 = vshrl.u32 %v745, 7
    %v747 = vsub.s32 %v744, %v746
    %v748 = vrot.slane %v738, %v747
    %v750 = vunpack.c.l.s4 1983009808
    %v751 = vunpack.c.0.s8 %v750
    %v752 = vlaneseq
    %v753 = vshrl.u32 %v752, 7
    %v754 = vsub.s32 %v751, %v753
    %v755 = vrot.slane %v741, %v754
    %v756 = vcombine.high %v748, %v748
    %757 = vrot.lane.b32.xlu0 %v748, 127
    %v758 = vpop.permute.xlu0 %757
    %759 = vrot.lane.b32.xlu0 %v756, 127
    %v760 = vpop.permute.xlu0 %759
    %761 = vrot.lane.b32.xlu0 %v755, 127
    %v762 = vpop.permute.xlu0 %761
    %v763 = vsel %vm45, %v758, %v760
    %v764 = vsel %vm45, %v760, %v762
    %v766 = vsel %vm48, %v739, 0
    %v769 = vsel %vm52, %v763, 0
    %v772 = vsel %vm52, %v764, 0
    %774 = vmatprep.subr.bf16.mxu0 %v772
    %775 = vmatpush1.bf16.msra.mxu0 %v769
    %776 = vmatprep.subr.bf16.mxu0 0
    %777 = vmatpush1.bf16.msra.mxu0 0
    %778 = vmatprep.subr.bf16.mxu0 0
    %779 = vmatpush1.bf16.msra.mxu0 0
    %780 = vmatprep.subr.bf16.mxu0 0
    %781 = vmatpush1.bf16.msra.mxu0 0
    %782 = vmatprep.subr.bf16.mxu0 0
    %783 = vmatpush1.bf16.msra.mxu0 0
    %784 = vmatprep.subr.bf16.mxu0 0
    %785 = vmatpush1.bf16.msra.mxu0 0
    %786 = vmatprep.subr.bf16.mxu0 0
    %787 = vmatpush1.bf16.msra.mxu0 0
    %788 = vmatprep.subr.bf16.mxu0 0
    %789 = vmatpush1.bf16.msra.mxu0 0
    %790 = vmatprep.subr.bf16.mxu0 0
    %791 = vmatpush1.bf16.msra.mxu0 0
    %792 = vmatprep.subr.bf16.mxu0 0
    %793 = vmatpush1.bf16.msra.mxu0 0
    %794 = vmatprep.subr.bf16.mxu0 0
    %795 = vmatpush1.bf16.msra.mxu0 0
    %796 = vmatprep.subr.bf16.mxu0 0
    %797 = vmatpush1.bf16.msra.mxu0 0
    %798 = vmatprep.subr.bf16.mxu0 0
    %799 = vmatpush1.bf16.msra.mxu0 0
    %800 = vmatprep.subr.bf16.mxu0 0
    %801 = vmatpush1.bf16.msra.mxu0 0
    %802 = vmatprep.subr.bf16.mxu0 0
    %803 = vmatpush1.bf16.msra.mxu0 0
    %804 = vmatprep.subr.bf16.mxu0 0
    %805 = vmatpush1.bf16.msra.mxu0 0
    %806 = vmatprep.mubr.bf16.mxu0 0
    %807 = vmatmul.mubr.bf16.gmra.mrb[0].mxu0 %v766
    %v808 = vpop.f32.mrb[0].mxu0
    %v809 = vadd.f32 0.0, %v808
    %v810 = vpop.f32.mrb[0].mxu0
    %v811 = vadd.f32 0.0, %v810
    %v812 = vpop.f32.mrb[0].mxu0
    %v813 = vpop.f32.mrb[0].mxu0
    %814 = vdwg.mxu0
    %v817 = vunpack.c.l.s4 1983009808
    %v818 = vunpack.c.0.s8 %v817
    %v819 = vlaneseq
    %v820 = vshrl.u32 %v819, 7
    %v821 = vsub.s32 %v818, %v820
    %v822 = vrot.slane %v736, %v821
    %v823 = vcombine.high %v822, %v822
    %v825 = vsel %vm48, %v737, 0
    %v828 = vsel %vm52, %v822, 0
    %v831 = vsel %vm52, %v823, 0
    %833 = vmatprep.subr.bf16.mxu0 %v831
    %834 = vmatpush1.bf16.msra.mxu0 %v828
    %835 = vmatprep.subr.bf16.mxu0 0
    %836 = vmatpush1.bf16.msra.mxu0 0
    %837 = vmatprep.subr.bf16.mxu0 0
    %838 = vmatpush1.bf16.msra.mxu0 0
    %839 = vmatprep.subr.bf16.mxu0 0
    %840 = vmatpush1.bf16.msra.mxu0 0
    %841 = vmatprep.subr.bf16.mxu0 0
    %842 = vmatpush1.bf16.msra.mxu0 0
    %843 = vmatprep.subr.bf16.mxu0 0
    %844 = vmatpush1.bf16.msra.mxu0 0
    %845 = vmatprep.subr.bf16.mxu0 0
    %846 = vmatpush1.bf16.msra.mxu0 0
    %847 = vmatprep.subr.bf16.mxu0 0
    %848 = vmatpush1.bf16.msra.mxu0 0
    %849 = vmatprep.subr.bf16.mxu0 0
    %850 = vmatpush1.bf16.msra.mxu0 0
    %851 = vmatprep.subr.bf16.mxu0 0
    %852 = vmatpush1.bf16.msra.mxu0 0
    %853 = vmatprep.subr.bf16.mxu0 0
    %854 = vmatpush1.bf16.msra.mxu0 0
    %855 = vmatprep.subr.bf16.mxu0 0
    %856 = vmatpush1.bf16.msra.mxu0 0
    %857 = vmatprep.subr.bf16.mxu0 0
    %858 = vmatpush1.bf16.msra.mxu0 0
    %859 = vmatprep.subr.bf16.mxu0 0
    %860 = vmatpush1.bf16.msra.mxu0 0
    %861 = vmatprep.subr.bf16.mxu0 0
    %862 = vmatpush1.bf16.msra.mxu0 0
    %863 = vmatprep.subr.bf16.mxu0 0
    %864 = vmatpush1.bf16.msra.mxu0 0
    %865 = vmatprep.mubr.bf16.mxu0 0
    %866 = vmatmul.mubr.bf16.gmra.mrb[0].mxu0 %v825
    %v867 = vpop.f32.mrb[0].mxu0
    %v868 = vadd.f32 %v809, %v867
    %v869 = vpop.f32.mrb[0].mxu0
    %v870 = vadd.f32 %v811, %v869
    %v871 = vpop.f32.mrb[0].mxu0
    %v872 = vpop.f32.mrb[0].mxu0
    %873 = vdwg.mxu0
    %v874 = vld [vmem:[%s735] sm:$0x3f]
    %v875 = vld [vmem:[%s160] sm:$0xf]
    %v877 = vcombine.high %v874, %v874
    %v879 = vunpack.c.l.s4 1983009808
    %v880 = vunpack.c.0.s8 %v879
    %v881 = vlaneseq
    %v882 = vshrl.u32 %v881, 7
    %v883 = vsub.s32 %v880, %v882
    %v884 = vrot.slane %v874, %v883
    %v886 = vunpack.c.l.s4 1983009808
    %v887 = vunpack.c.0.s8 %v886
    %v888 = vlaneseq
    %v889 = vshrl.u32 %v888, 7
    %v890 = vsub.s32 %v887, %v889
    %v891 = vrot.slane %v877, %v890
    %v892 = vcombine.high %v884, %v884
    %893 = vrot.lane.b32.xlu0 %v884, 126
    %v894 = vpop.permute.xlu0 %893
    %895 = vrot.lane.b32.xlu0 %v892, 126
    %v896 = vpop.permute.xlu0 %895
    %897 = vrot.lane.b32.xlu0 %v891, 126
    %v898 = vpop.permute.xlu0 %897
    %v899 = vsel %vm185, %v894, %v896
    %v900 = vsel %vm185, %v896, %v898
    %v902 = vsel %vm48, %v875, 0
    %v905 = vsel %vm52, %v899, 0
    %v908 = vsel %vm52, %v900, 0
    %910 = vmatprep.subr.bf16.mxu0 %v908
    %911 = vmatpush1.bf16.msra.mxu0 %v905
    %912 = vmatprep.subr.bf16.mxu0 0
    %913 = vmatpush1.bf16.msra.mxu0 0
    %914 = vmatprep.subr.bf16.mxu0 0
    %915 = vmatpush1.bf16.msra.mxu0 0
    %916 = vmatprep.subr.bf16.mxu0 0
    %917 = vmatpush1.bf16.msra.mxu0 0
    %918 = vmatprep.subr.bf16.mxu0 0
    %919 = vmatpush1.bf16.msra.mxu0 0
    %920 = vmatprep.subr.bf16.mxu0 0
    %921 = vmatpush1.bf16.msra.mxu0 0
    %922 = vmatprep.subr.bf16.mxu0 0
    %923 = vmatpush1.bf16.msra.mxu0 0
    %924 = vmatprep.subr.bf16.mxu0 0
    %925 = vmatpush1.bf16.msra.mxu0 0
    %926 = vmatprep.subr.bf16.mxu0 0
    %927 = vmatpush1.bf16.msra.mxu0 0
    %928 = vmatprep.subr.bf16.mxu0 0
    %929 = vmatpush1.bf16.msra.mxu0 0
    %930 = vmatprep.subr.bf16.mxu0 0
    %931 = vmatpush1.bf16.msra.mxu0 0
    %932 = vmatprep.subr.bf16.mxu0 0
    %933 = vmatpush1.bf16.msra.mxu0 0
    %934 = vmatprep.subr.bf16.mxu0 0
    %935 = vmatpush1.bf16.msra.mxu0 0
    %936 = vmatprep.subr.bf16.mxu0 0
    %937 = vmatpush1.bf16.msra.mxu0 0
    %938 = vmatprep.subr.bf16.mxu0 0
    %939 = vmatpush1.bf16.msra.mxu0 0
    %940 = vmatprep.subr.bf16.mxu0 0
    %941 = vmatpush1.bf16.msra.mxu0 0
    %942 = vmatprep.mubr.bf16.mxu0 0
    %943 = vmatmul.mubr.bf16.gmra.mrb[0].mxu0 %v902
    %v944 = vpop.f32.mrb[0].mxu0
    %v945 = vadd.f32 0.0, %v944
    %v946 = vpop.f32.mrb[0].mxu0
    %v947 = vadd.f32 0.0, %v946
    %v948 = vpop.f32.mrb[0].mxu0
    %v949 = vpop.f32.mrb[0].mxu0
    %950 = vdwg.mxu0
    %v951 = vadd.f32 %v868, %v945
    %v952 = vadd.f32 %v870, %v947
    %v953 = vld [vmem:[%s735] sm:$0x3f]
    %v954 = vld [vmem:[%s241] sm:$0xf]
    %v956 = vcombine.high %v953, %v953
    %v958 = vunpack.c.l.s4 1983009808
    %v959 = vunpack.c.0.s8 %v958
    %v960 = vlaneseq
    %v961 = vshrl.u32 %v960, 7
    %v962 = vsub.s32 %v959, %v961
    %v963 = vrot.slane %v953, %v962
    %v965 = vunpack.c.l.s4 1983009808
    %v966 = vunpack.c.0.s8 %v965
    %v967 = vlaneseq
    %v968 = vshrl.u32 %v967, 7
    %v969 = vsub.s32 %v966, %v968
    %v970 = vrot.slane %v956, %v969
    %v971 = vcombine.high %v963, %v963
    %972 = vrot.lane.b32.xlu0 %v963, 112
    %v973 = vpop.permute.xlu0 %972
    %974 = vrot.lane.b32.xlu0 %v971, 112
    %v975 = vpop.permute.xlu0 %974
    %976 = vrot.lane.b32.xlu0 %v970, 112
    %v977 = vpop.permute.xlu0 %976
    %v978 = vsel %vm266, %v973, %v975
    %v979 = vsel %vm266, %v975, %v977
    %v981 = vsel %vm48, %v954, 0
    %v984 = vsel %vm52, %v978, 0
    %v987 = vsel %vm52, %v979, 0
    %989 = vmatprep.subr.bf16.mxu0 %v987
    %990 = vmatpush1.bf16.msra.mxu0 %v984
    %991 = vmatprep.subr.bf16.mxu0 0
    %992 = vmatpush1.bf16.msra.mxu0 0
    %993 = vmatprep.subr.bf16.mxu0 0
    %994 = vmatpush1.bf16.msra.mxu0 0
    %995 = vmatprep.subr.bf16.mxu0 0
    %996 = vmatpush1.bf16.msra.mxu0 0
    %997 = vmatprep.subr.bf16.mxu0 0
    %998 = vmatpush1.bf16.msra.mxu0 0
    %999 = vmatprep.subr.bf16.mxu0 0
    %1000 = vmatpush1.bf16.msra.mxu0 0
    %1001 = vmatprep.subr.bf16.mxu0 0
    %1002 = vmatpush1.bf16.msra.mxu0 0
    %1003 = vmatprep.subr.bf16.mxu0 0
    %1004 = vmatpush1.bf16.msra.mxu0 0
    %1005 = vmatprep.subr.bf16.mxu0 0
    %1006 = vmatpush1.bf16.msra.mxu0 0
    %1007 = vmatprep.subr.bf16.mxu0 0
    %1008 = vmatpush1.bf16.msra.mxu0 0
    %1009 = vmatprep.subr.bf16.mxu0 0
    %1010 = vmatpush1.bf16.msra.mxu0 0
    %1011 = vmatprep.subr.bf16.mxu0 0
    %1012 = vmatpush1.bf16.msra.mxu0 0
    %1013 = vmatprep.subr.bf16.mxu0 0
    %1014 = vmatpush1.bf16.msra.mxu0 0
    %1015 = vmatprep.subr.bf16.mxu0 0
    %1016 = vmatpush1.bf16.msra.mxu0 0
    %1017 = vmatprep.subr.bf16.mxu0 0
    %1018 = vmatpush1.bf16.msra.mxu0 0
    %1019 = vmatprep.subr.bf16.mxu0 0
    %1020 = vmatpush1.bf16.msra.mxu0 0
    %1021 = vmatprep.mubr.bf16.mxu0 0
    %1022 = vmatmul.mubr.bf16.gmra.mrb[0].mxu0 %v981
    %v1023 = vpop.f32.mrb[0].mxu0
    %v1024 = vadd.f32 0.0, %v1023
    %v1025 = vpop.f32.mrb[0].mxu0
    %v1026 = vadd.f32 0.0, %v1025
    %v1027 = vpop.f32.mrb[0].mxu0
    %v1028 = vpop.f32.mrb[0].mxu0
    %1029 = vdwg.mxu0
    %v1030 = vadd.f32 %v951, %v1024
    %v1031 = vadd.f32 %v952, %v1026
    %v1032 = vld [vmem:[%s735] sm:$0x3f]
    %v1033 = vld [vmem:[%s322] sm:$0xf]
    %v1035 = vcombine.high %v1032, %v1032
    %v1037 = vunpack.c.l.s4 1983009808
    %v1038 = vunpack.c.0.s8 %v1037
    %v1039 = vlaneseq
    %v1040 = vshrl.u32 %v1039, 7
    %v1041 = vsub.s32 %v1038, %v1040
    %v1042 = vrot.slane %v1032, %v1041
    %v1044 = vunpack.c.l.s4 1983009808
    %v1045 = vunpack.c.0.s8 %v1044
    %v1046 = vlaneseq
    %v1047 = vshrl.u32 %v1046, 7
    %v1048 = vsub.s32 %v1045, %v1047
    %v1049 = vrot.slane %v1035, %v1048
    %v1050 = vcombine.high %v1042, %v1042
    %1051 = vrot.lane.b32.xlu0 %v1042, 111
    %v1052 = vpop.permute.xlu0 %1051
    %1053 = vrot.lane.b32.xlu0 %v1050, 111
    %v1054 = vpop.permute.xlu0 %1053
    %1055 = vrot.lane.b32.xlu0 %v1049, 111
    %v1056 = vpop.permute.xlu0 %1055
    %v1057 = vsel %vm347, %v1052, %v1054
    %v1058 = vsel %vm347, %v1054, %v1056
    %v1060 = vsel %vm48, %v1033, 0
    %v1063 = vsel %vm52, %v1057, 0
    %v1066 = vsel %vm52, %v1058, 0
    %1068 = vmatprep.subr.bf16.mxu0 %v1066
    %1069 = vmatpush1.bf16.msra.mxu0 %v1063
    %1070 = vmatprep.subr.bf16.mxu0 0
    %1071 = vmatpush1.bf16.msra.mxu0 0
    %1072 = vmatprep.subr.bf16.mxu0 0
    %1073 = vmatpush1.bf16.msra.mxu0 0
    %1074 = vmatprep.subr.bf16.mxu0 0
    %1075 = vmatpush1.bf16.msra.mxu0 0
    %1076 = vmatprep.subr.bf16.mxu0 0
    %1077 = vmatpush1.bf16.msra.mxu0 0
    %1078 = vmatprep.subr.bf16.mxu0 0
    %1079 = vmatpush1.bf16.msra.mxu0 0
    %1080 = vmatprep.subr.bf16.mxu0 0
    %1081 = vmatpush1.bf16.msra.mxu0 0
    %1082 = vmatprep.subr.bf16.mxu0 0
    %1083 = vmatpush1.bf16.msra.mxu0 0
    %1084 = vmatprep.subr.bf16.mxu0 0
    %1085 = vmatpush1.bf16.msra.mxu0 0
    %1086 = vmatprep.subr.bf16.mxu0 0
    %1087 = vmatpush1.bf16.msra.mxu0 0
    %1088 = vmatprep.subr.bf16.mxu0 0
    %1089 = vmatpush1.bf16.msra.mxu0 0
    %1090 = vmatprep.subr.bf16.mxu0 0
    %1091 = vmatpush1.bf16.msra.mxu0 0
    %1092 = vmatprep.subr.bf16.mxu0 0
    %1093 = vmatpush1.bf16.msra.mxu0 0
    %1094 = vmatprep.subr.bf16.mxu0 0
    %1095 = vmatpush1.bf16.msra.mxu0 0
    %1096 = vmatprep.subr.bf16.mxu0 0
    %1097 = vmatpush1.bf16.msra.mxu0 0
    %1098 = vmatprep.subr.bf16.mxu0 0
    %1099 = vmatpush1.bf16.msra.mxu0 0
    %1100 = vmatprep.mubr.bf16.mxu0 0
    %1101 = vmatmul.mubr.bf16.gmra.mrb[0].mxu0 %v1060
    %v1102 = vpop.f32.mrb[0].mxu0
    %v1103 = vadd.f32 0.0, %v1102
    %v1104 = vpop.f32.mrb[0].mxu0
    %v1105 = vadd.f32 0.0, %v1104
    %v1106 = vpop.f32.mrb[0].mxu0
    %v1107 = vpop.f32.mrb[0].mxu0
    %1108 = vdwg.mxu0
    %v1109 = vadd.f32 %v1030, %v1103
    %v1110 = vadd.f32 %v1031, %v1105
    %v1111 = vld [vmem:[%s735] sm:$0x3f]
    %v1112 = vld [vmem:[%s403] sm:$0xf]
    %v1114 = vcombine.high %v1111, %v1111
    %v1116 = vunpack.c.l.s4 1983009808
    %v1117 = vunpack.c.0.s8 %v1116
    %v1118 = vlaneseq
    %v1119 = vshrl.u32 %v1118, 7
    %v1120 = vsub.s32 %v1117, %v1119
    %v1121 = vrot.slane %v1111, %v1120
    %v1123 = vunpack.c.l.s4 1983009808
    %v1124 = vunpack.c.0.s8 %v1123
    %v1125 = vlaneseq
    %v1126 = vshrl.u32 %v1125, 7
    %v1127 = vsub.s32 %v1124, %v1126
    %v1128 = vrot.slane %v1114, %v1127
    %v1129 = vcombine.high %v1121, %v1121
    %1130 = vrot.lane.b32.xlu0 %v1121, 110
    %v1131 = vpop.permute.xlu0 %1130
    %1132 = vrot.lane.b32.xlu0 %v1129, 110
    %v1133 = vpop.permute.xlu0 %1132
    %1134 = vrot.lane.b32.xlu0 %v1128, 110
    %v1135 = vpop.permute.xlu0 %1134
    %v1136 = vsel %vm428, %v1131, %v1133
    %v1137 = vsel %vm428, %v1133, %v1135
    %v1139 = vsel %vm48, %v1112, 0
    %v1142 = vsel %vm52, %v1136, 0
    %v1145 = vsel %vm52, %v1137, 0
    %1147 = vmatprep.subr.bf16.mxu0 %v1145
    %1148 = vmatpush1.bf16.msra.mxu0 %v1142
    %1149 = vmatprep.subr.bf16.mxu0 0
    %1150 = vmatpush1.bf16.msra.mxu0 0
    %1151 = vmatprep.subr.bf16.mxu0 0
    %1152 = vmatpush1.bf16.msra.mxu0 0
    %1153 = vmatprep.subr.bf16.mxu0 0
    %1154 = vmatpush1.bf16.msra.mxu0 0
    %1155 = vmatprep.subr.bf16.mxu0 0
    %1156 = vmatpush1.bf16.msra.mxu0 0
    %1157 = vmatprep.subr.bf16.mxu0 0
    %1158 = vmatpush1.bf16.msra.mxu0 0
    %1159 = vmatprep.subr.bf16.mxu0 0
    %1160 = vmatpush1.bf16.msra.mxu0 0
    %1161 = vmatprep.subr.bf16.mxu0 0
    %1162 = vmatpush1.bf16.msra.mxu0 0
    %1163 = vmatprep.subr.bf16.mxu0 0
    %1164 = vmatpush1.bf16.msra.mxu0 0
    %1165 = vmatprep.subr.bf16.mxu0 0
    %1166 = vmatpush1.bf16.msra.mxu0 0
    %1167 = vmatprep.subr.bf16.mxu0 0
    %1168 = vmatpush1.bf16.msra.mxu0 0
    %1169 = vmatprep.subr.bf16.mxu0 0
    %1170 = vmatpush1.bf16.msra.mxu0 0
    %1171 = vmatprep.subr.bf16.mxu0 0
    %1172 = vmatpush1.bf16.msra.mxu0 0
    %1173 = vmatprep.subr.bf16.mxu0 0
    %1174 = vmatpush1.bf16.msra.mxu0 0
    %1175 = vmatprep.subr.bf16.mxu0 0
    %1176 = vmatpush1.bf16.msra.mxu0 0
    %1177 = vmatprep.subr.bf16.mxu0 0
    %1178 = vmatpush1.bf16.msra.mxu0 0
    %1179 = vmatprep.mubr.bf16.mxu0 0
    %1180 = vmatmul.mubr.bf16.gmra.mrb[0].mxu0 %v1139
    %v1181 = vpop.f32.mrb[0].mxu0
    %v1182 = vadd.f32 0.0, %v1181
    %v1183 = vpop.f32.mrb[0].mxu0
    %v1184 = vadd.f32 0.0, %v1183
    %v1185 = vpop.f32.mrb[0].mxu0
    %v1186 = vpop.f32.mrb[0].mxu0
    %1187 = vdwg.mxu0
    %v1188 = vadd.f32 %v1109, %v1182
    %v1189 = vadd.f32 %v1110, %v1184
    %v1190 = vld [vmem:[%s735] sm:$0x3f]
    %v1191 = vld [vmem:[%s484] sm:$0xf]
    %v1193 = vcombine.high %v1190, %v1190
    %v1195 = vunpack.c.l.s4 1983009808
    %v1196 = vunpack.c.0.s8 %v1195
    %v1197 = vlaneseq
    %v1198 = vshrl.u32 %v1197, 7
    %v1199 = vsub.s32 %v1196, %v1198
    %v1200 = vrot.slane %v1190, %v1199
    %v1202 = vunpack.c.l.s4 1983009808
    %v1203 = vunpack.c.0.s8 %v1202
    %v1204 = vlaneseq
    %v1205 = vshrl.u32 %v1204, 7
    %v1206 = vsub.s32 %v1203, %v1205
    %v1207 = vrot.slane %v1193, %v1206
    %v1208 = vcombine.high %v1200, %v1200
    %1209 = vrot.lane.b32.xlu0 %v1200, 96
    %v1210 = vpop.permute.xlu0 %1209
    %1211 = vrot.lane.b32.xlu0 %v1208, 96
    %v1212 = vpop.permute.xlu0 %1211
    %1213 = vrot.lane.b32.xlu0 %v1207, 96
    %v1214 = vpop.permute.xlu0 %1213
    %v1215 = vsel %vm509, %v1210, %v1212
    %v1216 = vsel %vm509, %v1212, %v1214
    %v1218 = vsel %vm48, %v1191, 0
    %v1221 = vsel %vm52, %v1215, 0
    %v1224 = vsel %vm52, %v1216, 0
    %1226 = vmatprep.subr.bf16.mxu0 %v1224
    %1227 = vmatpush1.bf16.msra.mxu0 %v1221
    %1228 = vmatprep.subr.bf16.mxu0 0
    %1229 = vmatpush1.bf16.msra.mxu0 0
    %1230 = vmatprep.subr.bf16.mxu0 0
    %1231 = vmatpush1.bf16.msra.mxu0 0
    %1232 = vmatprep.subr.bf16.mxu0 0
    %1233 = vmatpush1.bf16.msra.mxu0 0
    %1234 = vmatprep.subr.bf16.mxu0 0
    %1235 = vmatpush1.bf16.msra.mxu0 0
    %1236 = vmatprep.subr.bf16.mxu0 0
    %1237 = vmatpush1.bf16.msra.mxu0 0
    %1238 = vmatprep.subr.bf16.mxu0 0
    %1239 = vmatpush1.bf16.msra.mxu0 0
    %1240 = vmatprep.subr.bf16.mxu0 0
    %1241 = vmatpush1.bf16.msra.mxu0 0
    %1242 = vmatprep.subr.bf16.mxu0 0
    %1243 = vmatpush1.bf16.msra.mxu0 0
    %1244 = vmatprep.subr.bf16.mxu0 0
    %1245 = vmatpush1.bf16.msra.mxu0 0
    %1246 = vmatprep.subr.bf16.mxu0 0
    %1247 = vmatpush1.bf16.msra.mxu0 0
    %1248 = vmatprep.subr.bf16.mxu0 0
    %1249 = vmatpush1.bf16.msra.mxu0 0
    %1250 = vmatprep.subr.bf16.mxu0 0
    %1251 = vmatpush1.bf16.msra.mxu0 0
    %1252 = vmatprep.subr.bf16.mxu0 0
    %1253 = vmatpush1.bf16.msra.mxu0 0
    %1254 = vmatprep.subr.bf16.mxu0 0
    %1255 = vmatpush1.bf16.msra.mxu0 0
    %1256 = vmatprep.subr.bf16.mxu0 0
    %1257 = vmatpush1.bf16.msra.mxu0 0
    %1258 = vmatprep.mubr.bf16.mxu0 0
    %1259 = vmatmul.mubr.bf16.gmra.mrb[0].mxu0 %v1218
    %v1260 = vpop.f32.mrb[0].mxu0
    %v1261 = vadd.f32 0.0, %v1260
    %v1262 = vpop.f32.mrb[0].mxu0
    %v1263 = vadd.f32 0.0, %v1262
    %v1264 = vpop.f32.mrb[0].mxu0
    %v1265 = vpop.f32.mrb[0].mxu0
    %1266 = vdwg.mxu0
    %v1267 = vadd.f32 %v1188, %v1261
    %v1268 = vadd.f32 %v1189, %v1263
    %v1269 = vld [vmem:[%s735] sm:$0x3f]
    %v1270 = vld [vmem:[%s565] sm:$0xf]
    %v1272 = vcombine.high %v1269, %v1269
    %v1274 = vunpack.c.l.s4 1983009808
    %v1275 = vunpack.c.0.s8 %v1274
    %v1276 = vlaneseq
    %v1277 = vshrl.u32 %v1276, 7
    %v1278 = vsub.s32 %v1275, %v1277
    %v1279 = vrot.slane %v1269, %v1278
    %v1281 = vunpack.c.l.s4 1983009808
    %v1282 = vunpack.c.0.s8 %v1281
    %v1283 = vlaneseq
    %v1284 = vshrl.u32 %v1283, 7
    %v1285 = vsub.s32 %v1282, %v1284
    %v1286 = vrot.slane %v1272, %v1285
    %v1287 = vcombine.high %v1279, %v1279
    %1288 = vrot.lane.b32.xlu0 %v1279, 95
    %v1289 = vpop.permute.xlu0 %1288
    %1290 = vrot.lane.b32.xlu0 %v1287, 95
    %v1291 = vpop.permute.xlu0 %1290
    %1292 = vrot.lane.b32.xlu0 %v1286, 95
    %v1293 = vpop.permute.xlu0 %1292
    %v1294 = vsel %vm590, %v1289, %v1291
    %v1295 = vsel %vm590, %v1291, %v1293
    %v1297 = vsel %vm48, %v1270, 0
    %v1300 = vsel %vm52, %v1294, 0
    %v1303 = vsel %vm52, %v1295, 0
    %1305 = vmatprep.subr.bf16.mxu0 %v1303
    %1306 = vmatpush1.bf16.msra.mxu0 %v1300
    %1307 = vmatprep.subr.bf16.mxu0 0
    %1308 = vmatpush1.bf16.msra.mxu0 0
    %1309 = vmatprep.subr.bf16.mxu0 0
    %1310 = vmatpush1.bf16.msra.mxu0 0
    %1311 = vmatprep.subr.bf16.mxu0 0
    %1312 = vmatpush1.bf16.msra.mxu0 0
    %1313 = vmatprep.subr.bf16.mxu0 0
    %1314 = vmatpush1.bf16.msra.mxu0 0
    %1315 = vmatprep.subr.bf16.mxu0 0
    %1316 = vmatpush1.bf16.msra.mxu0 0
    %1317 = vmatprep.subr.bf16.mxu0 0
    %1318 = vmatpush1.bf16.msra.mxu0 0
    %1319 = vmatprep.subr.bf16.mxu0 0
    %1320 = vmatpush1.bf16.msra.mxu0 0
    %1321 = vmatprep.subr.bf16.mxu0 0
    %1322 = vmatpush1.bf16.msra.mxu0 0
    %1323 = vmatprep.subr.bf16.mxu0 0
    %1324 = vmatpush1.bf16.msra.mxu0 0
    %1325 = vmatprep.subr.bf16.mxu0 0
    %1326 = vmatpush1.bf16.msra.mxu0 0
    %1327 = vmatprep.subr.bf16.mxu0 0
    %1328 = vmatpush1.bf16.msra.mxu0 0
    %1329 = vmatprep.subr.bf16.mxu0 0
    %1330 = vmatpush1.bf16.msra.mxu0 0
    %1331 = vmatprep.subr.bf16.mxu0 0
    %1332 = vmatpush1.bf16.msra.mxu0 0
    %1333 = vmatprep.subr.bf16.mxu0 0
    %1334 = vmatpush1.bf16.msra.mxu0 0
    %1335 = vmatprep.subr.bf16.mxu0 0
    %1336 = vmatpush1.bf16.msra.mxu0 0
    %1337 = vmatprep.mubr.bf16.mxu0 0
    %1338 = vmatmul.mubr.bf16.gmra.mrb[0].mxu0 %v1297
    %v1339 = vpop.f32.mrb[0].mxu0
    %v1340 = vadd.f32 0.0, %v1339
    %v1341 = vpop.f32.mrb[0].mxu0
    %v1342 = vadd.f32 0.0, %v1341
    %v1343 = vpop.f32.mrb[0].mxu0
    %v1344 = vpop.f32.mrb[0].mxu0
    %1345 = vdwg.mxu0
    %v1346 = vadd.f32 %v1267, %v1340
    %v1347 = vadd.f32 %v1268, %v1342
    %v1348 = vld [vmem:[%s735] sm:$0x3f]
    %v1349 = vld [vmem:[%s646] sm:$0xf]
    %v1351 = vcombine.high %v1348, %v1348
    %v1353 = vunpack.c.l.s4 1983009808
    %v1354 = vunpack.c.0.s8 %v1353
    %v1355 = vlaneseq
    %v1356 = vshrl.u32 %v1355, 7
    %v1357 = vsub.s32 %v1354, %v1356
    %v1358 = vrot.slane %v1348, %v1357
    %v1360 = vunpack.c.l.s4 1983009808
    %v1361 = vunpack.c.0.s8 %v1360
    %v1362 = vlaneseq
    %v1363 = vshrl.u32 %v1362, 7
    %v1364 = vsub.s32 %v1361, %v1363
    %v1365 = vrot.slane %v1351, %v1364
    %v1366 = vcombine.high %v1358, %v1358
    %1367 = vrot.lane.b32.xlu0 %v1358, 94
    %v1368 = vpop.permute.xlu0 %1367
    %1369 = vrot.lane.b32.xlu0 %v1366, 94
    %v1370 = vpop.permute.xlu0 %1369
    %1371 = vrot.lane.b32.xlu0 %v1365, 94
    %v1372 = vpop.permute.xlu0 %1371
    %v1373 = vsel %vm671, %v1368, %v1370
    %v1374 = vsel %vm671, %v1370, %v1372
    %v1376 = vsel %vm48, %v1349, 0
    %v1379 = vsel %vm52, %v1373, 0
    %v1382 = vsel %vm52, %v1374, 0
    %1384 = vmatprep.subr.bf16.mxu0 %v1382
    %1385 = vmatpush1.bf16.msra.mxu0 %v1379
    %1386 = vmatprep.subr.bf16.mxu0 0
    %1387 = vmatpush1.bf16.msra.mxu0 0
    %1388 = vmatprep.subr.bf16.mxu0 0
    %1389 = vmatpush1.bf16.msra.mxu0 0
    %1390 = vmatprep.subr.bf16.mxu0 0
    %1391 = vmatpush1.bf16.msra.mxu0 0
    %1392 = vmatprep.subr.bf16.mxu0 0
    %1393 = vmatpush1.bf16.msra.mxu0 0
    %1394 = vmatprep.subr.bf16.mxu0 0
    %1395 = vmatpush1.bf16.msra.mxu0 0
    %1396 = vmatprep.subr.bf16.mxu0 0
    %1397 = vmatpush1.bf16.msra.mxu0 0
    %1398 = vmatprep.subr.bf16.mxu0 0
    %1399 = vmatpush1.bf16.msra.mxu0 0
    %1400 = vmatprep.subr.bf16.mxu0 0
    %1401 = vmatpush1.bf16.msra.mxu0 0
    %1402 = vmatprep.subr.bf16.mxu0 0
    %1403 = vmatpush1.bf16.msra.mxu0 0
    %1404 = vmatprep.subr.bf16.mxu0 0
    %1405 = vmatpush1.bf16.msra.mxu0 0
    %1406 = vmatprep.subr.bf16.mxu0 0
    %1407 = vmatpush1.bf16.msra.mxu0 0
    %1408 = vmatprep.subr.bf16.mxu0 0
    %1409 = vmatpush1.bf16.msra.mxu0 0
    %1410 = vmatprep.subr.bf16.mxu0 0
    %1411 = vmatpush1.bf16.msra.mxu0 0
    %1412 = vmatprep.subr.bf16.mxu0 0
    %1413 = vmatpush1.bf16.msra.mxu0 0
    %1414 = vmatprep.subr.bf16.mxu0 0
    %1415 = vmatpush1.bf16.msra.mxu0 0
    %1416 = vmatprep.mubr.bf16.mxu0 0
    %1417 = vmatmul.mubr.bf16.gmra.mrb[0].mxu0 %v1376
    %v1418 = vpop.f32.mrb[0].mxu0
    %v1419 = vadd.f32 0.0, %v1418
    %v1420 = vpop.f32.mrb[0].mxu0
    %v1421 = vadd.f32 0.0, %v1420
    %v1422 = vpop.f32.mrb[0].mxu0
    %v1423 = vpop.f32.mrb[0].mxu0
    %1424 = vdwg.mxu0
    %v1425 = vadd.f32 %v1346, %v1419
    %v1426 = vadd.f32 %v1347, %v1421
    %v1427 = vadd.f32 %v1425, %v729
    %v1428 = vadd.f32 %v1426, %v729
    %s1429 = scalar_lea.vmem [#allocation2], 16
    %1430 = vst [vmem:[%s1429] sm:$0xff] %v1427
    %1431 = vst [vmem:[%s1429 + $0x8] sm:$0xff] %v1428
    // Predicated region
    $region14: #{tpu_custom_call.1} parent=1 // pred_check
      _
    $region15: #{tpu_custom_call.1} parent=1 // pred_check_branch
      %1433 = sbr.rel (0) target = $region17
    $region16: #{tpu_custom_call.1} parent=1 // pred_region
      %s1435 = ssub.s32 512, 512
      %1436 = vsyncadd [#allocation3], %s1435
      %s1437 = sshll.u32 [#allocation2], 4
      %s1438 = int_to_ptr.vmem [resolvable:$true] %s1437
      %1443 = dma.vmem_to_hbm [thread:$0]  %s1438, 512, %s3, [#allocation3], 256, 256, 16
    $region17: #{tpu_custom_call.1} parent=1 // pred_fallthru
      _
    // Predicated region
    $region18: #{tpu_custom_call.1} parent=1 // pred_check
      _
    $region19: #{tpu_custom_call.1} parent=1 // pred_check_branch
      %1445 = sbr.rel (0) target = $region21
    $region20: #{tpu_custom_call.1} parent=1 // pred_region
      %1446 = dma.done [#allocation3], 512
    $region21: #{tpu_custom_call.1} parent=1 // pred_fallthru
      _
    %1447 = vsyncpa [#allocation3], 1

</llo_original>
